<compile_context>
chip_gen: v6e
topology: v6e:2x2x1
jax: 0.10.0
libtpu: 0.0.40
codegen_flags: <defaults>
</compile_context>

<pallas_src>
import functools

import jax
import jax.numpy as jnp
from jax.experimental import pallas as pl
from jax.experimental.pallas import tpu as pltpu

# ---- model hyper-parameters (from the module __init__) ----------------------
EMB1 = 8      # embedding_size1
EMB2 = 4      # embedding_size2
EMB3 = 4      # embedding_size3
LIN1 = 32     # linear_size1
LIN2 = 16     # linear_size2
N_ATOMS = 1   # only value for which the forward pass is shape-consistent
OUT_CHANNELS = 4

NEG_SLOPE = 0.01  # F.leaky_relu default
TILE_N = 128      # column tile (lane axis); N is padded to a multiple of this


def _lrelu(x):
    return jnp.where(x > 0, x, NEG_SLOPE * x)


# -----------------------------------------------------------------------------
# Kernels.  Everything runs in a transposed, lane-dense layout:
#   activations are [features, N_pad]  (features <= 32 on sublanes, padded node
#   count on the 128-lane axis).  Torch weights [out, in] are used directly as
#   W @ h, so there are no in-kernel transposes.  The adjacency passed in is
#   A_hat^T (== A_hat for undirected graphs), in bfloat16.
# -----------------------------------------------------------------------------

def head_kernel(zt_ref, wi_ref, bi_ref, w1_ref, p1_ref):
    # h = leaky_relu(Wi @ z^T + bi) ;  p1 = W1 @ h   (the "XW" of conv1)
    h = _lrelu(jnp.dot(wi_ref[...], zt_ref[...],
                       preferred_element_type=jnp.float32) + bi_ref[...])
    p1 = jnp.dot(w1_ref[...], h, preferred_element_type=jnp.float32)
    p1_ref[...] = p1.astype(p1_ref.dtype)


def gcn_mid_kernel(p_ref, a_ref, b_ref, wn_ref, out_ref):
    # One column tile of a GCN layer, fused with the next layer's XW:
    #   h_tile = p @ At[:, tile] + b ;  out_tile = W_next @ h_tile
    h = jnp.dot(p_ref[...], a_ref[...],
                preferred_element_type=jnp.float32) + b_ref[...]
    out_ref[...] = jnp.dot(wn_ref[...], h,
                           preferred_element_type=jnp.float32).astype(out_ref.dtype)


def gcn_tail_kernel(p_ref, a_ref, b3_ref, w4_ref, b4_ref, w5_ref, b5_ref,
                    w6_ref, b6_ref, out_ref):
    # Last GCN layer + the three leaky-relu Linear layers, per column tile.
    h = jnp.dot(p_ref[...], a_ref[...],
                preferred_element_type=jnp.float32) + b3_ref[...]          # [4,  T]
    h = _lrelu(jnp.dot(w4_ref[...], h,
                       preferred_element_type=jnp.float32) + b4_ref[...])  # [32, T]
    h = _lrelu(jnp.dot(w5_ref[...], h,
                       preferred_element_type=jnp.float32) + b5_ref[...])  # [16, T]
    out_ref[...] = _lrelu(jnp.dot(w6_ref[...], h,
                                  preferred_element_type=jnp.float32) + b6_ref[...])


# -----------------------------------------------------------------------------
# Wrapper-side glue (adjacency build, padding, layout prep, pallas_calls).
# -----------------------------------------------------------------------------

def build_norm_adj(edge_index, num_nodes, n_pad=None):
    """Dense D^-1/2 (A + I) D^-1/2 (PyG gcn_norm), zero-padded to [n_pad, n_pad]."""
    n_pad = num_nodes if n_pad is None else n_pad
    src, dst = edge_index[0], edge_index[1]
    adj = jnp.zeros((n_pad, n_pad), jnp.float32)
    adj = adj.at[dst, src].add(1.0)                 # message flows src -> dst
    r = jnp.arange(num_nodes)
    adj = adj.at[r, r].add(1.0)                     # self-loops on real nodes only
    deg = adj.sum(axis=1)
    dinv = jnp.where(deg > 0, jax.lax.rsqrt(deg), 0.0)
    return dinv[:, None] * adj * dinv[None, :]      # padded rows/cols stay zero


def _compiler_params(n_pad, tile_n):
    # A^T column tile (bf16) dominates per-step VMEM; the pipeline double-buffers
    # inputs/outputs.  Cap at 64 MiB so the setting is valid on v7x as well.
    a_tile = n_pad * tile_n * 2
    resident = 64 * n_pad * 4 + 64 * tile_n * 4     # full activations + out tile (generous)
    need = 2 * (a_tile + resident) + (4 << 20)
    return pltpu.CompilerParams(
        dimension_semantics=("parallel",),          # v7x: shard tiles across 2 TCs
        vmem_limit_bytes=int(min(max(need, 8 << 20), 64 << 20)),
    )


def _full(shape):
    return pl.BlockSpec(shape, lambda j: (0, 0))


def _cols(rows, tile_n):
    return pl.BlockSpec((rows, tile_n), lambda j: (0, j))


@functools.partial(jax.jit, static_argnames=("tile_n",))
def variational_gcn_decoder(z, edge_index, params, *, tile_n=TILE_N):
    n = z.shape[0]
    n_pad = ((n + tile_n - 1) // tile_n) * tile_n
    grid = (n_pad // tile_n,)
    cp = _compiler_params(n_pad, tile_n)

    (wi, bi), (w1, b1), (w2, b2), (w3, b3), (w4, b4), (w5, b5), (w6, b6) = params

    # Hoist all layout plumbing out of the kernels: column biases, bf16 A^T,
    # transposed / zero-padded node features.
    col = lambda b: b.reshape(-1, 1).astype(jnp.float32)
    a_t = build_norm_adj(edge_index, n, n_pad).T.astype(jnp.bfloat16)  # A_hat^T
    zt = jnp.zeros((OUT_CHANNELS, n_pad), jnp.float32).at[:, :n].set(z.T)

    a_spec = pl.BlockSpec((n_pad, tile_n), lambda j: (0, j))

    # stage 0: p1 = W1 @ leaky_relu(Wi @ z^T + bi)
    p1 = pl.pallas_call(
        head_kernel,
        out_shape=jax.ShapeDtypeStruct((EMB2, n_pad), jnp.bfloat16),
        grid=grid,
        in_specs=[_cols(OUT_CHANNELS, tile_n), _full(wi.shape),
                  _full((LIN2, 1)), _full(w1.shape)],
        out_specs=_cols(EMB2, tile_n),
        compiler_params=cp,
    )(zt, wi, col(bi), w1)

    # stage 1: p2 = W2 @ (p1 @ A^T + b1)          (conv1 -> XW of conv2)
    p2 = pl.pallas_call(
        gcn_mid_kernel,
        out_shape=jax.ShapeDtypeStruct((EMB1, n_pad), jnp.bfloat16),
        grid=grid,
        in_specs=[_full((EMB2, n_pad)), a_spec, _full((EMB2, 1)), _full(w2.shape)],
        out_specs=_cols(EMB1, tile_n),
        compiler_params=cp,
    )(p1, a_t, col(b1), w2)

    # stage 2: p3 = W3 @ (p2 @ A^T + b2)          (conv2 -> XW of conv3)
    p3 = pl.pallas_call(
        gcn_mid_kernel,
        out_shape=jax.ShapeDtypeStruct((EMB3, n_pad), jnp.bfloat16),
        grid=grid,
        in_specs=[_full((EMB1, n_pad)), a_spec, _full((EMB1, 1)), _full(w3.shape)],
        out_specs=_cols(EMB3, tile_n),
        compiler_params=cp,
    )(p2, a_t, col(b2), w3)

    # stage 3: conv3 + linear1..3 (+ leaky_relu)  -> output^T [4, n_pad] (f32)
    out_t = pl.pallas_call(
        gcn_tail_kernel,
        out_shape=jax.ShapeDtypeStruct((OUT_CHANNELS, n_pad), jnp.float32),
        grid=grid,
        in_specs=[_full((EMB3, n_pad)), a_spec, _full((EMB3, 1)),
                  _full(w4.shape), _full((LIN1, 1)),
                  _full(w5.shape), _full((LIN2, 1)),
                  _full(w6.shape), _full((OUT_CHANNELS, 1))],
        out_specs=_cols(OUT_CHANNELS, tile_n),
        compiler_params=cp,
    )(p3, a_t, col(b3), w4, col(b4), w5, col(b5), w6, col(b6))

    # forward() returns (z, edge_index)
    return out_t[:, :n].T, edge_index


# -----------------------------------------------------------------------------
# Reference and parameter construction.
# -----------------------------------------------------------------------------

def init_params(key):
    """Deterministic parameters.  Weights [out, in] (torch layout); biases [out]."""
    shapes = [
        (LIN2, OUT_CHANNELS),      # inv_transform
        (EMB2, LIN2),              # conv1
        (EMB1, EMB2),              # conv2
        (EMB3, EMB1),              # conv3
        (LIN1, EMB3 * N_ATOMS),    # linear1
        (LIN2, LIN1),              # linear2
        (OUT_CHANNELS, LIN2),      # linear3
    ]
    params = []
    for i, (o, c) in enumerate(shapes):
        kw, kb = jax.random.split(jax.random.fold_in(key, i))
        w = 0.1 * jax.random.normal(kw, (o, c), jnp.float32)
        b = 0.1 * jax.random.normal(kb, (o,), jnp.float32)
        params.append((w, b))
    return tuple(params)


def reference_forward(z, edge_index, params):
    """Plain-JAX f32 reference mirroring the PyTorch forward (sanity check)."""
    a = build_norm_adj(edge_index, z.shape[0])
    (wi, bi), (w1, b1), (w2, b2), (w3, b3), (w4, b4), (w5, b5), (w6, b6) = params
    h = _lrelu(z @ wi.T + bi)
    h = a @ (h @ w1.T) + b1
    h = a @ (h @ w2.T) + b2
    h = a @ (h @ w3.T) + b3
    h = _lrelu(h @ w4.T + b4)
    h = _lrelu(h @ w5.T + b5)
    return _lrelu(h @ w6.T + b6)


if __name__ == "__main__":
    key = jax.random.PRNGKey(0)
    params = init_params(jax.random.fold_in(key, 200))

    # ---- test 1: tiny symmetric ring graph (batch_size * n_atoms = 8 nodes) ----
    n = 8
    z = jax.random.normal(jax.random.fold_in(key, 100), (n, OUT_CHANNELS), jnp.float32)
    i = jnp.arange(n, dtype=jnp.int32)
    j = (i + 1) % n
    edge_index = jnp.stack([jnp.concatenate([i, j]), jnp.concatenate([j, i])], axis=0)

    out, ei = variational_gcn_decoder(z, edge_index, params)
    out = jax.block_until_ready(out)
    ref = reference_forward(z, edge_index, params)
    assert out.shape == (n, OUT_CHANNELS)
    assert jnp.allclose(out, ref, atol=2e-2, rtol=2e-2), "mismatch vs reference (ring)"

    # ---- test 2: larger random graph exercising a multi-tile parallel grid ----
    n2 = 300
    z2 = jax.random.normal(jax.random.fold_in(key, 101), (n2, OUT_CHANNELS), jnp.float32)
    ek = jax.random.fold_in(key, 102)
    src = jax.random.randint(ek, (600,), 0, n2, dtype=jnp.int32)
    dst = jax.random.randint(jax.random.fold_in(ek, 1), (600,), 0, n2, dtype=jnp.int32)
    edge_index2 = jnp.stack([jnp.concatenate([src, dst]),
                             jnp.concatenate([dst, src])], axis=0)

    out2, _ = variational_gcn_decoder(z2, edge_index2, params)
    out2 = jax.block_until_ready(out2)
    ref2 = reference_forward(z2, edge_index2, params)
    assert out2.shape == (n2, OUT_CHANNELS)
    assert jnp.allclose(out2, ref2, atol=2e-2, rtol=2e-2), "mismatch vs reference (random)"

    print("KERNEL_OK")
</pallas_src>

<mosaic_0001>
module attributes {stable_mosaic.version = 11 : i64} {
  func.func private @main(%arg0: i32) attributes {dimension_semantics = [#tpu.dimension_semantics<core_parallel>], iteration_bounds = array<i64: 2>, tpu.core_type = #tpu.core_type<sc_scalar_subcore>, window_params = []} {
    return
  }
}

module attributes {stable_mosaic.version = 11 : i64} {
  func.func private @main(%arg0: i32) attributes {dimension_semantics = [#tpu.dimension_semantics<core_parallel>], iteration_bounds = array<i64: 2>, tpu.core_type = #tpu.core_type<sc_scalar_subcore>, window_params = []} {
    return
  }
}

module attributes {stable_mosaic.version = 11 : i64} {
  func.func @head_kernel(%arg0: i32, %arg1: memref<4x128xf32, #tpu.memory_space<vmem>>, %arg2: memref<16x4xf32, #tpu.memory_space<vmem>>, %arg3: memref<16x1xf32, #tpu.memory_space<vmem>>, %arg4: memref<4x16xf32, #tpu.memory_space<vmem>>, %arg5: memref<4x128xbf16, #tpu.memory_space<vmem>>) attributes {dimension_semantics = [#tpu.dimension_semantics<parallel>], iteration_bounds = array<i64: 1>, scalar_prefetch = 0 : i64, scratch_operands = 0 : i64, tpu.core_type = #tpu.core_type<tc>, window_params = [{transform_indices = @transform_0, window_bounds = array<i64: 4, 128>}, {pipeline_mode = #tpu.pipeline_mode<synchronous>, transform_indices = @transform_1, window_bounds = array<i64: 16, 4>}, {pipeline_mode = #tpu.pipeline_mode<synchronous>, transform_indices = @transform_2, window_bounds = array<i64: 16, 1>}, {pipeline_mode = #tpu.pipeline_mode<synchronous>, transform_indices = @transform_3, window_bounds = array<i64: 4, 16>}, {transform_indices = @transform_4, window_bounds = array<i64: 4, 128>}]} {
    %c0 = arith.constant 0 : index
    %c0_0 = arith.constant 0 : index
    %0 = vector.load %arg2[%c0, %c0_0] : memref<16x4xf32, #tpu.memory_space<vmem>>, vector<16x4xf32>
    %c0_1 = arith.constant 0 : index
    %c0_2 = arith.constant 0 : index
    %1 = vector.load %arg1[%c0_1, %c0_2] : memref<4x128xf32, #tpu.memory_space<vmem>>, vector<4x128xf32>
    %cst = arith.constant dense<0.000000e+00> : vector<16x128xf32>
    %2 = tpu.matmul %0, %1, %cst {dimension_numbers = #tpu.dot_dimension_numbers<[1], [0], [0], [1], [0, 0, 1, 1], [], []>} : vector<16x4xf32>, vector<4x128xf32>, vector<16x128xf32> -> vector<16x128xf32>
    %c0_3 = arith.constant 0 : index
    %c0_4 = arith.constant 0 : index
    %3 = vector.load %arg3[%c0_3, %c0_4] : memref<16x1xf32, #tpu.memory_space<vmem>>, vector<16x1xf32>
    %4 = vector.broadcast %3 : vector<16x1xf32> to vector<16x128xf32>
    %5 = arith.addf %2, %4 : vector<16x128xf32>
    %cst_5 = arith.constant 0.000000e+00 : f32
    %6 = vector.broadcast %cst_5 : f32 to vector<16x128xf32>
    %7 = arith.cmpf ogt, %5, %6 : vector<16x128xf32>
    %cst_6 = arith.constant 0.00999999977 : f32
    %8 = vector.broadcast %cst_6 : f32 to vector<16x128xf32>
    %9 = arith.mulf %8, %5 : vector<16x128xf32>
    %10 = arith.select %7, %5, %9 : vector<16x128xi1>, vector<16x128xf32>
    %c0_7 = arith.constant 0 : index
    %c0_8 = arith.constant 0 : index
    %11 = vector.load %arg4[%c0_7, %c0_8] : memref<4x16xf32, #tpu.memory_space<vmem>>, vector<4x16xf32>
    %cst_9 = arith.constant dense<0.000000e+00> : vector<4x128xf32>
    %12 = tpu.matmul %11, %10, %cst_9 {dimension_numbers = #tpu.dot_dimension_numbers<[1], [0], [0], [1], [0, 0, 1, 1], [], []>} : vector<4x16xf32>, vector<16x128xf32>, vector<4x128xf32> -> vector<4x128xf32>
    %13 = arith.truncf %12 : vector<4x128xf32> to vector<4x128xbf16>
    %c0_10 = arith.constant 0 : index
    %c0_11 = arith.constant 0 : index
    %14 = vector.load %arg5[%c0_10, %c0_11] : memref<4x128xbf16, #tpu.memory_space<vmem>>, vector<4x128xbf16>
    tpu.vector_store %arg5[%c0_10, %c0_11], %13 {strides = array<i32>} : memref<4x128xbf16, #tpu.memory_space<vmem>>, vector<4x128xbf16>,
    return
  }
  func.func @transform_0(%arg0: i32) -> (i32, i32) {
    %c0_i32 = arith.constant 0 : i32
    %c0_i32_0 = arith.constant 0 : i32
    return %c0_i32, %arg0 : i32, i32
  }
  func.func @transform_1(%arg0: i32) -> (i32, i32) {
    %c0_i32 = arith.constant 0 : i32
    %c0_i32_0 = arith.constant 0 : i32
    %c0_i32_1 = arith.constant 0 : i32
    return %c0_i32, %c0_i32_0 : i32, i32
  }
  func.func @transform_2(%arg0: i32) -> (i32, i32) {
    %c0_i32 = arith.constant 0 : i32
    %c0_i32_0 = arith.constant 0 : i32
    %c0_i32_1 = arith.constant 0 : i32
    return %c0_i32, %c0_i32_0 : i32, i32
  }
  func.func @transform_3(%arg0: i32) -> (i32, i32) {
    %c0_i32 = arith.constant 0 : i32
    %c0_i32_0 = arith.constant 0 : i32
    %c0_i32_1 = arith.constant 0 : i32
    return %c0_i32, %c0_i32_0 : i32, i32
  }
  func.func @transform_4(%arg0: i32) -> (i32, i32) {
    %c0_i32 = arith.constant 0 : i32
    %c0_i32_0 = arith.constant 0 : i32
    return %c0_i32, %arg0 : i32, i32
  }
}

module attributes {stable_mosaic.version = 11 : i64} {
  func.func @gcn_mid_kernel(%arg0: i32, %arg1: memref<4x128xbf16, #tpu.memory_space<vmem>>, %arg2: memref<128x128xbf16, #tpu.memory_space<vmem>>, %arg3: memref<4x1xf32, #tpu.memory_space<vmem>>, %arg4: memref<8x4xf32, #tpu.memory_space<vmem>>, %arg5: memref<8x128xbf16, #tpu.memory_space<vmem>>) attributes {dimension_semantics = [#tpu.dimension_semantics<parallel>], iteration_bounds = array<i64: 1>, scalar_prefetch = 0 : i64, scratch_operands = 0 : i64, tpu.core_type = #tpu.core_type<tc>, window_params = [{pipeline_mode = #tpu.pipeline_mode<synchronous>, transform_indices = @transform_0, window_bounds = array<i64: 4, 128>}, {transform_indices = @transform_1, window_bounds = array<i64: 128, 128>}, {pipeline_mode = #tpu.pipeline_mode<synchronous>, transform_indices = @transform_2, window_bounds = array<i64: 4, 1>}, {pipeline_mode = #tpu.pipeline_mode<synchronous>, transform_indices = @transform_3, window_bounds = array<i64: 8, 4>}, {transform_indices = @transform_4, window_bounds = array<i64: 8, 128>}]} {
    %c0 = arith.constant 0 : index
    %c0_0 = arith.constant 0 : index
    %0 = vector.load %arg1[%c0, %c0_0] : memref<4x128xbf16, #tpu.memory_space<vmem>>, vector<4x128xbf16>
    %c0_1 = arith.constant 0 : index
    %c0_2 = arith.constant 0 : index
    %1 = vector.load %arg2[%c0_1, %c0_2] : memref<128x128xbf16, #tpu.memory_space<vmem>>, vector<128x128xbf16>
    %cst = arith.constant dense<0.000000e+00> : vector<4x128xf32>
    %2 = tpu.matmul %0, %1, %cst {dimension_numbers = #tpu.dot_dimension_numbers<[1], [0], [0], [1], [0, 0, 1, 1], [], []>} : vector<4x128xbf16>, vector<128x128xbf16>, vector<4x128xf32> -> vector<4x128xf32>
    %c0_3 = arith.constant 0 : index
    %c0_4 = arith.constant 0 : index
    %3 = vector.load %arg3[%c0_3, %c0_4] : memref<4x1xf32, #tpu.memory_space<vmem>>, vector<4x1xf32>
    %4 = vector.broadcast %3 : vector<4x1xf32> to vector<4x128xf32>
    %5 = arith.addf %2, %4 : vector<4x128xf32>
    %c0_5 = arith.constant 0 : index
    %c0_6 = arith.constant 0 : index
    %6 = vector.load %arg4[%c0_5, %c0_6] : memref<8x4xf32, #tpu.memory_space<vmem>>, vector<8x4xf32>
    %cst_7 = arith.constant dense<0.000000e+00> : vector<8x128xf32>
    %7 = tpu.matmul %6, %5, %cst_7 {dimension_numbers = #tpu.dot_dimension_numbers<[1], [0], [0], [1], [0, 0, 1, 1], [], []>} : vector<8x4xf32>, vector<4x128xf32>, vector<8x128xf32> -> vector<8x128xf32>
    %8 = arith.truncf %7 : vector<8x128xf32> to vector<8x128xbf16>
    %c0_8 = arith.constant 0 : index
    %c0_9 = arith.constant 0 : index
    %9 = vector.load %arg5[%c0_8, %c0_9] : memref<8x128xbf16, #tpu.memory_space<vmem>>, vector<8x128xbf16>
    tpu.vector_store %arg5[%c0_8, %c0_9], %8 {strides = array<i32>} : memref<8x128xbf16, #tpu.memory_space<vmem>>, vector<8x128xbf16>,
    return
  }
  func.func @transform_0(%arg0: i32) -> (i32, i32) {
    %c0_i32 = arith.constant 0 : i32
    %c0_i32_0 = arith.constant 0 : i32
    %c0_i32_1 = arith.constant 0 : i32
    return %c0_i32, %c0_i32_0 : i32, i32
  }
  func.func @transform_1(%arg0: i32) -> (i32, i32) {
    %c0_i32 = arith.constant 0 : i32
    %c0_i32_0 = arith.constant 0 : i32
    return %c0_i32, %arg0 : i32, i32
  }
  func.func @transform_2(%arg0: i32) -> (i32, i32) {
    %c0_i32 = arith.constant 0 : i32
    %c0_i32_0 = arith.constant 0 : i32
    %c0_i32_1 = arith.constant 0 : i32
    return %c0_i32, %c0_i32_0 : i32, i32
  }
  func.func @transform_3(%arg0: i32) -> (i32, i32) {
    %c0_i32 = arith.constant 0 : i32
    %c0_i32_0 = arith.constant 0 : i32
    %c0_i32_1 = arith.constant 0 : i32
    return %c0_i32, %c0_i32_0 : i32, i32
  }
  func.func @transform_4(%arg0: i32) -> (i32, i32) {
    %c0_i32 = arith.constant 0 : i32
    %c0_i32_0 = arith.constant 0 : i32
    return %c0_i32, %arg0 : i32, i32
  }
}

module attributes {stable_mosaic.version = 11 : i64} {
  func.func @gcn_mid_kernel(%arg0: i32, %arg1: memref<8x128xbf16, #tpu.memory_space<vmem>>, %arg2: memref<128x128xbf16, #tpu.memory_space<vmem>>, %arg3: memref<8x1xf32, #tpu.memory_space<vmem>>, %arg4: memref<4x8xf32, #tpu.memory_space<vmem>>, %arg5: memref<4x128xbf16, #tpu.memory_space<vmem>>) attributes {dimension_semantics = [#tpu.dimension_semantics<parallel>], iteration_bounds = array<i64: 1>, scalar_prefetch = 0 : i64, scratch_operands = 0 : i64, tpu.core_type = #tpu.core_type<tc>, window_params = [{pipeline_mode = #tpu.pipeline_mode<synchronous>, transform_indices = @transform_0, window_bounds = array<i64: 8, 128>}, {transform_indices = @transform_1, window_bounds = array<i64: 128, 128>}, {pipeline_mode = #tpu.pipeline_mode<synchronous>, transform_indices = @transform_2, window_bounds = array<i64: 8, 1>}, {pipeline_mode = #tpu.pipeline_mode<synchronous>, transform_indices = @transform_3, window_bounds = array<i64: 4, 8>}, {transform_indices = @transform_4, window_bounds = array<i64: 4, 128>}]} {
    %c0 = arith.constant 0 : index
    %c0_0 = arith.constant 0 : index
    %0 = vector.load %arg1[%c0, %c0_0] : memref<8x128xbf16, #tpu.memory_space<vmem>>, vector<8x128xbf16>
    %c0_1 = arith.constant 0 : index
    %c0_2 = arith.constant 0 : index
    %1 = vector.load %arg2[%c0_1, %c0_2] : memref<128x128xbf16, #tpu.memory_space<vmem>>, vector<128x128xbf16>
    %cst = arith.constant dense<0.000000e+00> : vector<8x128xf32>
    %2 = tpu.matmul %0, %1, %cst {dimension_numbers = #tpu.dot_dimension_numbers<[1], [0], [0], [1], [0, 0, 1, 1], [], []>} : vector<8x128xbf16>, vector<128x128xbf16>, vector<8x128xf32> -> vector<8x128xf32>
    %c0_3 = arith.constant 0 : index
    %c0_4 = arith.constant 0 : index
    %3 = vector.load %arg3[%c0_3, %c0_4] : memref<8x1xf32, #tpu.memory_space<vmem>>, vector<8x1xf32>
    %4 = vector.broadcast %3 : vector<8x1xf32> to vector<8x128xf32>
    %5 = arith.addf %2, %4 : vector<8x128xf32>
    %c0_5 = arith.constant 0 : index
    %c0_6 = arith.constant 0 : index
    %6 = vector.load %arg4[%c0_5, %c0_6] : memref<4x8xf32, #tpu.memory_space<vmem>>, vector<4x8xf32>
    %cst_7 = arith.constant dense<0.000000e+00> : vector<4x128xf32>
    %7 = tpu.matmul %6, %5, %cst_7 {dimension_numbers = #tpu.dot_dimension_numbers<[1], [0], [0], [1], [0, 0, 1, 1], [], []>} : vector<4x8xf32>, vector<8x128xf32>, vector<4x128xf32> -> vector<4x128xf32>
    %8 = arith.truncf %7 : vector<4x128xf32> to vector<4x128xbf16>
    %c0_8 = arith.constant 0 : index
    %c0_9 = arith.constant 0 : index
    %9 = vector.load %arg5[%c0_8, %c0_9] : memref<4x128xbf16, #tpu.memory_space<vmem>>, vector<4x128xbf16>
    tpu.vector_store %arg5[%c0_8, %c0_9], %8 {strides = array<i32>} : memref<4x128xbf16, #tpu.memory_space<vmem>>, vector<4x128xbf16>,
    return
  }
  func.func @transform_0(%arg0: i32) -> (i32, i32) {
    %c0_i32 = arith.constant 0 : i32
    %c0_i32_0 = arith.constant 0 : i32
    %c0_i32_1 = arith.constant 0 : i32
    return %c0_i32, %c0_i32_0 : i32, i32
  }
  func.func @transform_1(%arg0: i32) -> (i32, i32) {
    %c0_i32 = arith.constant 0 : i32
    %c0_i32_0 = arith.constant 0 : i32
    return %c0_i32, %arg0 : i32, i32
  }
  func.func @transform_2(%arg0: i32) -> (i32, i32) {
    %c0_i32 = arith.constant 0 : i32
    %c0_i32_0 = arith.constant 0 : i32
    %c0_i32_1 = arith.constant 0 : i32
    return %c0_i32, %c0_i32_0 : i32, i32
  }
  func.func @transform_3(%arg0: i32) -> (i32, i32) {
    %c0_i32 = arith.constant 0 : i32
    %c0_i32_0 = arith.constant 0 : i32
    %c0_i32_1 = arith.constant 0 : i32
    return %c0_i32, %c0_i32_0 : i32, i32
  }
  func.func @transform_4(%arg0: i32) -> (i32, i32) {
    %c0_i32 = arith.constant 0 : i32
    %c0_i32_0 = arith.constant 0 : i32
    return %c0_i32, %arg0 : i32, i32
  }
}

module attributes {stable_mosaic.version = 11 : i64} {
  func.func @gcn_tail_kernel(%arg0: i32, %arg1: memref<4x128xbf16, #tpu.memory_space<vmem>>, %arg2: memref<128x128xbf16, #tpu.memory_space<vmem>>, %arg3: memref<4x1xf32, #tpu.memory_space<vmem>>, %arg4: memref<32x4xf32, #tpu.memory_space<vmem>>, %arg5: memref<32x1xf32, #tpu.memory_space<vmem>>, %arg6: memref<16x32xf32, #tpu.memory_space<vmem>>, %arg7: memref<16x1xf32, #tpu.memory_space<vmem>>, %arg8: memref<4x16xf32, #tpu.memory_space<vmem>>, %arg9: memref<4x1xf32, #tpu.memory_space<vmem>>, %arg10: memref<4x128xf32, #tpu.memory_space<vmem>>) attributes {dimension_semantics = [#tpu.dimension_semantics<parallel>], iteration_bounds = array<i64: 1>, scalar_prefetch = 0 : i64, scratch_operands = 0 : i64, tpu.core_type = #tpu.core_type<tc>, window_params = [{pipeline_mode = #tpu.pipeline_mode<synchronous>, transform_indices = @transform_0, window_bounds = array<i64: 4, 128>}, {transform_indices = @transform_1, window_bounds = array<i64: 128, 128>}, {pipeline_mode = #tpu.pipeline_mode<synchronous>, transform_indices = @transform_2, window_bounds = array<i64: 4, 1>}, {pipeline_mode = #tpu.pipeline_mode<synchronous>, transform_indices = @transform_3, window_bounds = array<i64: 32, 4>}, {pipeline_mode = #tpu.pipeline_mode<synchronous>, transform_indices = @transform_4, window_bounds = array<i64: 32, 1>}, {pipeline_mode = #tpu.pipeline_mode<synchronous>, transform_indices = @transform_5, window_bounds = array<i64: 16, 32>}, {pipeline_mode = #tpu.pipeline_mode<synchronous>, transform_indices = @transform_6, window_bounds = array<i64: 16, 1>}, {pipeline_mode = #tpu.pipeline_mode<synchronous>, transform_indices = @transform_7, window_bounds = array<i64: 4, 16>}, {pipeline_mode = #tpu.pipeline_mode<synchronous>, transform_indices = @transform_8, window_bounds = array<i64: 4, 1>}, {transform_indices = @transform_9, window_bounds = array<i64: 4, 128>}]} {
    %c0 = arith.constant 0 : index
    %c0_0 = arith.constant 0 : index
    %0 = vector.load %arg1[%c0, %c0_0] : memref<4x128xbf16, #tpu.memory_space<vmem>>, vector<4x128xbf16>
    %c0_1 = arith.constant 0 : index
    %c0_2 = arith.constant 0 : index
    %1 = vector.load %arg2[%c0_1, %c0_2] : memref<128x128xbf16, #tpu.memory_space<vmem>>, vector<128x128xbf16>
    %cst = arith.constant dense<0.000000e+00> : vector<4x128xf32>
    %2 = tpu.matmul %0, %1, %cst {dimension_numbers = #tpu.dot_dimension_numbers<[1], [0], [0], [1], [0, 0, 1, 1], [], []>} : vector<4x128xbf16>, vector<128x128xbf16>, vector<4x128xf32> -> vector<4x128xf32>
    %c0_3 = arith.constant 0 : index
    %c0_4 = arith.constant 0 : index
    %3 = vector.load %arg3[%c0_3, %c0_4] : memref<4x1xf32, #tpu.memory_space<vmem>>, vector<4x1xf32>
    %4 = vector.broadcast %3 : vector<4x1xf32> to vector<4x128xf32>
    %5 = arith.addf %2, %4 : vector<4x128xf32>
    %c0_5 = arith.constant 0 : index
    %c0_6 = arith.constant 0 : index
    %6 = vector.load %arg4[%c0_5, %c0_6] : memref<32x4xf32, #tpu.memory_space<vmem>>, vector<32x4xf32>
    %cst_7 = arith.constant dense<0.000000e+00> : vector<32x128xf32>
    %7 = tpu.matmul %6, %5, %cst_7 {dimension_numbers = #tpu.dot_dimension_numbers<[1], [0], [0], [1], [0, 0, 1, 1], [], []>} : vector<32x4xf32>, vector<4x128xf32>, vector<32x128xf32> -> vector<32x128xf32>
    %c0_8 = arith.constant 0 : index
    %c0_9 = arith.constant 0 : index
    %8 = vector.load %arg5[%c0_8, %c0_9] : memref<32x1xf32, #tpu.memory_space<vmem>>, vector<32x1xf32>
    %9 = vector.broadcast %8 : vector<32x1xf32> to vector<32x128xf32>
    %10 = arith.addf %7, %9 : vector<32x128xf32>
    %cst_10 = arith.constant 0.000000e+00 : f32
    %11 = vector.broadcast %cst_10 : f32 to vector<32x128xf32>
    %12 = arith.cmpf ogt, %10, %11 : vector<32x128xf32>
    %cst_11 = arith.constant 0.00999999977 : f32
    %13 = vector.broadcast %cst_11 : f32 to vector<32x128xf32>
    %14 = arith.mulf %13, %10 : vector<32x128xf32>
    %15 = arith.select %12, %10, %14 : vector<32x128xi1>, vector<32x128xf32>
    %c0_12 = arith.constant 0 : index
    %c0_13 = arith.constant 0 : index
    %16 = vector.load %arg6[%c0_12, %c0_13] : memref<16x32xf32, #tpu.memory_space<vmem>>, vector<16x32xf32>
    %cst_14 = arith.constant dense<0.000000e+00> : vector<16x128xf32>
    %17 = tpu.matmul %16, %15, %cst_14 {dimension_numbers = #tpu.dot_dimension_numbers<[1], [0], [0], [1], [0, 0, 1, 1], [], []>} : vector<16x32xf32>, vector<32x128xf32>, vector<16x128xf32> -> vector<16x128xf32>
    %c0_15 = arith.constant 0 : index
    %c0_16 = arith.constant 0 : index
    %18 = vector.load %arg7[%c0_15, %c0_16] : memref<16x1xf32, #tpu.memory_space<vmem>>, vector<16x1xf32>
    %19 = vector.broadcast %18 : vector<16x1xf32> to vector<16x128xf32>
    %20 = arith.addf %17, %19 : vector<16x128xf32>
    %cst_17 = arith.constant 0.000000e+00 : f32
    %21 = vector.broadcast %cst_17 : f32 to vector<16x128xf32>
    %22 = arith.cmpf ogt, %20, %21 : vector<16x128xf32>
    %cst_18 = arith.constant 0.00999999977 : f32
    %23 = vector.broadcast %cst_18 : f32 to vector<16x128xf32>
    %24 = arith.mulf %23, %20 : vector<16x128xf32>
    %25 = arith.select %22, %20, %24 : vector<16x128xi1>, vector<16x128xf32>
    %c0_19 = arith.constant 0 : index
    %c0_20 = arith.constant 0 : index
    %26 = vector.load %arg8[%c0_19, %c0_20] : memref<4x16xf32, #tpu.memory_space<vmem>>, vector<4x16xf32>
    %cst_21 = arith.constant dense<0.000000e+00> : vector<4x128xf32>
    %27 = tpu.matmul %26, %25, %cst_21 {dimension_numbers = #tpu.dot_dimension_numbers<[1], [0], [0], [1], [0, 0, 1, 1], [], []>} : vector<4x16xf32>, vector<16x128xf32>, vector<4x128xf32> -> vector<4x128xf32>
    %c0_22 = arith.constant 0 : index
    %c0_23 = arith.constant 0 : index
    %28 = vector.load %arg9[%c0_22, %c0_23] : memref<4x1xf32, #tpu.memory_space<vmem>>, vector<4x1xf32>
    %29 = vector.broadcast %28 : vector<4x1xf32> to vector<4x128xf32>
    %30 = arith.addf %27, %29 : vector<4x128xf32>
    %cst_24 = arith.constant 0.000000e+00 : f32
    %31 = vector.broadcast %cst_24 : f32 to vector<4x128xf32>
    %32 = arith.cmpf ogt, %30, %31 : vector<4x128xf32>
    %cst_25 = arith.constant 0.00999999977 : f32
    %33 = vector.broadcast %cst_25 : f32 to vector<4x128xf32>
    %34 = arith.mulf %33, %30 : vector<4x128xf32>
    %35 = arith.select %32, %30, %34 : vector<4x128xi1>, vector<4x128xf32>
    %c0_26 = arith.constant 0 : index
    %c0_27 = arith.constant 0 : index
    %36 = vector.load %arg10[%c0_26, %c0_27] : memref<4x128xf32, #tpu.memory_space<vmem>>, vector<4x128xf32>
    tpu.vector_store %arg10[%c0_26, %c0_27], %35 {strides = array<i32>} : memref<4x128xf32, #tpu.memory_space<vmem>>, vector<4x128xf32>,
    return
  }
  func.func @transform_0(%arg0: i32) -> (i32, i32) {
    %c0_i32 = arith.constant 0 : i32
    %c0_i32_0 = arith.constant 0 : i32
    %c0_i32_1 = arith.constant 0 : i32
    return %c0_i32, %c0_i32_0 : i32, i32
  }
  func.func @transform_1(%arg0: i32) -> (i32, i32) {
    %c0_i32 = arith.constant 0 : i32
    %c0_i32_0 = arith.constant 0 : i32
    return %c0_i32, %arg0 : i32, i32
  }
  func.func @transform_2(%arg0: i32) -> (i32, i32) {
    %c0_i32 = arith.constant 0 : i32
    %c0_i32_0 = arith.constant 0 : i32
    %c0_i32_1 = arith.constant 0 : i32
    return %c0_i32, %c0_i32_0 : i32, i32
  }
  func.func @transform_3(%arg0: i32) -> (i32, i32) {
    %c0_i32 = arith.constant 0 : i32
    %c0_i32_0 = arith.constant 0 : i32
    %c0_i32_1 = arith.constant 0 : i32
    return %c0_i32, %c0_i32_0 : i32, i32
  }
  func.func @transform_4(%arg0: i32) -> (i32, i32) {
    %c0_i32 = arith.constant 0 : i32
    %c0_i32_0 = arith.constant 0 : i32
    %c0_i32_1 = arith.constant 0 : i32
    return %c0_i32, %c0_i32_0 : i32, i32
  }
  func.func @transform_5(%arg0: i32) -> (i32, i32) {
    %c0_i32 = arith.constant 0 : i32
    %c0_i32_0 = arith.constant 0 : i32
    %c0_i32_1 = arith.constant 0 : i32
    return %c0_i32, %c0_i32_0 : i32, i32
  }
  func.func @transform_6(%arg0: i32) -> (i32, i32) {
    %c0_i32 = arith.constant 0 : i32
    %c0_i32_0 = arith.constant 0 : i32
    %c0_i32_1 = arith.constant 0 : i32
    return %c0_i32, %c0_i32_0 : i32, i32
  }
  func.func @transform_7(%arg0: i32) -> (i32, i32) {
    %c0_i32 = arith.constant 0 : i32
    %c0_i32_0 = arith.constant 0 : i32
    %c0_i32_1 = arith.constant 0 : i32
    return %c0_i32, %c0_i32_0 : i32, i32
  }
  func.func @transform_8(%arg0: i32) -> (i32, i32) {
    %c0_i32 = arith.constant 0 : i32
    %c0_i32_0 = arith.constant 0 : i32
    %c0_i32_1 = arith.constant 0 : i32
    return %c0_i32, %c0_i32_0 : i32, i32
  }
  func.func @transform_9(%arg0: i32) -> (i32, i32) {
    %c0_i32 = arith.constant 0 : i32
    %c0_i32_0 = arith.constant 0 : i32
    return %c0_i32, %arg0 : i32, i32
  }
}

</mosaic_0001>

<llo_original>
// kernel: variational_gcn_decoder.4
$region0: #{variational_gcn_decoder.4}
  #allocation0 [shape = 'u32[]', space=smem, size = 0x4, offset = 0x4, fixed_abs, tag = 'smem constant byte address 0x4 - core index']
  #allocation1 [shape = 'u32[144,128]{1,0:T(1,128)}', space=vmem, size = 0x12000, scoped, tag = 'internal scratch']
  %s0 = inlined_call_operand.vmem [shape: f32[4,128], index: 0, kind: input, shape index: {}]
  %s1 = inlined_call_operand.vmem [shape: f32[16,4], index: 1, kind: input, shape index: {}]
  %s2 = inlined_call_operand.vmem [shape: f32[16,1], index: 2, kind: input, shape index: {}]
  %s3 = inlined_call_operand.vmem [shape: f32[4,16], index: 3, kind: input, shape index: {}]
  %s4 = inlined_call_operand.vmem [shape: bf16[4,128], index: 4, kind: output, shape index: {}]
  %s5 = sld [smem:[#allocation0]]
  $region26: #{variational_gcn_decoder.4} parent=0
    _
  %s7 = ssub.s32 1, %s5
  %s8 = scalar_select 0, %s7, %s5
  // Predicated region
  $region2: #{variational_gcn_decoder.4} parent=0 // pred_check
    _
  $region3: #{variational_gcn_decoder.4} parent=0 // pred_check_branch
    %10 = sbr.rel (0) target = $region5
  $region4: #{variational_gcn_decoder.4} parent=0 // pred_region
    _
  $region5: #{variational_gcn_decoder.4} parent=0 // pred_fallthru
    _
  // Predicated region
  $region6: #{variational_gcn_decoder.4} parent=0 // pred_check
    _
  $region7: #{variational_gcn_decoder.4} parent=0 // pred_check_branch
    %12 = sbr.rel (0) target = $region9
  $region8: #{variational_gcn_decoder.4} parent=0 // pred_region
    _
  $region9: #{variational_gcn_decoder.4} parent=0 // pred_fallthru
    _
  // Predicated region
  $region10: #{variational_gcn_decoder.4} parent=0 // pred_check
    _
  $region11: #{variational_gcn_decoder.4} parent=0 // pred_check_branch
    %14 = sbr.rel (0) target = $region13
  $region12: #{variational_gcn_decoder.4} parent=0 // pred_region
    _
  $region13: #{variational_gcn_decoder.4} parent=0 // pred_fallthru
    _
  // Predicated region
  $region14: #{variational_gcn_decoder.4} parent=0 // pred_check
    _
  $region15: #{variational_gcn_decoder.4} parent=0 // pred_check_branch
    %16 = sbr.rel (0) target = $region17
  $region16: #{variational_gcn_decoder.4} parent=0 // pred_region
    _
  $region17: #{variational_gcn_decoder.4} parent=0 // pred_fallthru
    _
  %v17 = vld [vmem:[%s1] sm:$0xff]
  %v18 = vld [vmem:[%s1 + $0x8] sm:$0xff]
  %v19 = vld [vmem:[%s0] sm:$0xf]
  %v20 = vld [vmem:[%s2] sm:$0xff]
  %v21 = vld [vmem:[%s2 + $0x8] sm:$0xff]
  %23 = vset.pattern.permute.xlu0 0
  %24 = vperm.xlu0 %23, %v20
  %v25 = vpop.permute.xlu0 %24
  %28 = vset.pattern.permute.xlu0 0
  %29 = vperm.xlu0 %28, %v21
  %v30 = vpop.permute.xlu0 %29
  %vm32 = vcmask 31744
  %v34 = vsel %vm32, %v17, 0
  %v37 = vsel %vm32, %v18, 0
  %vm39 = vcmask 1043456
  %v41 = vsel %vm39, %v19, 0
  %43 = vmatprep.subr.mxu0 0.0
  %44 = vmatpush1.msra.mxu0 0.0
  %45 = vmatprep.subr.mxu0 0.0
  %46 = vmatpush1.msra.mxu0 0.0
  %47 = vmatprep.subr.mxu0 0.0
  %48 = vmatpush1.msra.mxu0 0.0
  %49 = vmatprep.subr.mxu0 0.0
  %50 = vmatpush1.msra.mxu0 0.0
  %51 = vmatprep.subr.mxu0 0.0
  %52 = vmatpush1.msra.mxu0 0.0
  %53 = vmatprep.subr.mxu0 0.0
  %54 = vmatpush1.msra.mxu0 0.0
  %55 = vmatprep.subr.mxu0 0.0
  %56 = vmatpush1.msra.mxu0 0.0
  %57 = vmatprep.subr.mxu0 0.0
  %58 = vmatpush1.msra.mxu0 0.0
  %59 = vmatprep.subr.mxu0 0.0
  %60 = vmatpush1.msra.mxu0 0.0
  %61 = vmatprep.subr.mxu0 0.0
  %62 = vmatpush1.msra.mxu0 0.0
  %63 = vmatprep.subr.mxu0 0.0
  %64 = vmatpush1.msra.mxu0 0.0
  %65 = vmatprep.subr.mxu0 0.0
  %66 = vmatpush1.msra.mxu0 0.0
  %67 = vmatprep.subr.mxu0 0.0
  %68 = vmatpush1.msra.mxu0 0.0
  %69 = vmatprep.subr.mxu0 0.0
  %70 = vmatpush1.msra.mxu0 0.0
  %71 = vmatprep.subr.mxu0 0.0
  %72 = vmatpush1.msra.mxu0 0.0
  %73 = vmatprep.subr.mxu0 0.0
  %74 = vmatpush1.msra.mxu0 %v41
  %75 = vmatprep.subr.mxu0 0.0
  %76 = vmatpush2.msra.mxu0 0.0
  %77 = vmatprep.subr.mxu0 0.0
  %78 = vmatpush2.msra.mxu0 0.0
  %79 = vmatprep.subr.mxu0 0.0
  %80 = vmatpush2.msra.mxu0 0.0
  %81 = vmatprep.subr.mxu0 0.0
  %82 = vmatpush2.msra.mxu0 0.0
  %83 = vmatprep.subr.mxu0 0.0
  %84 = vmatpush2.msra.mxu0 0.0
  %85 = vmatprep.subr.mxu0 0.0
  %86 = vmatpush2.msra.mxu0 0.0
  %87 = vmatprep.subr.mxu0 0.0
  %88 = vmatpush2.msra.mxu0 0.0
  %89 = vmatprep.subr.mxu0 0.0
  %90 = vmatpush2.msra.mxu0 0.0
  %91 = vmatprep.subr.mxu0 0.0
  %92 = vmatpush2.msra.mxu0 0.0
  %93 = vmatprep.subr.mxu0 0.0
  %94 = vmatpush2.msra.mxu0 0.0
  %95 = vmatprep.subr.mxu0 0.0
  %96 = vmatpush2.msra.mxu0 0.0
  %97 = vmatprep.subr.mxu0 0.0
  %98 = vmatpush2.msra.mxu0 0.0
  %99 = vmatprep.subr.mxu0 0.0
  %100 = vmatpush2.msra.mxu0 0.0
  %101 = vmatprep.subr.mxu0 0.0
  %102 = vmatpush2.msra.mxu0 0.0
  %103 = vmatprep.subr.mxu0 0.0
  %104 = vmatpush2.msra.mxu0 0.0
  %105 = vmatprep.subr.mxu0 0.0
  %106 = vmatpush2.msra.mxu0 0.0
  %107 = vmatprep.mubr.f32.mxu0 0.0
  %108 = vmatmul.mubr.f32.gmra.mxu0 %v34
  %v109 = vpop.f32.mrf.mxu0
  %v110 = vadd.f32 %v25, %v109
  %v111 = vpop.f32.mrf.mxu0
  %112 = vmatprep.mubr.f32.mxu0 0.0
  %113 = vmatmul.mubr.f32.gmra.mxu0 %v37
  %v114 = vpop.f32.mrf.mxu0
  %v115 = vadd.f32 %v30, %v114
  %v116 = vpop.f32.mrf.mxu0
  %117 = vdwg.mxu0
  %vm118 = vcmp.gt.f32.partialorder %v110, 0.0
  %vm119 = vcmp.gt.f32.partialorder %v115, 0.0
  %v120 = vmul.f32 %v110, 0.01
  %v121 = vmul.f32 %v115, 0.01
  %v122 = vsel %vm118, %v110, %v120
  %v123 = vsel %vm119, %v115, %v121
  %v124 = vld [vmem:[%s3] sm:$0xf]
  %vm125 = vcmask 130048
  %v127 = vsel %vm125, %v124, 0
  %129 = vmatprep.subr.mxu0 0.0
  %130 = vmatpush1.msra.mxu0 0.0
  %131 = vmatprep.subr.mxu0 0.0
  %132 = vmatpush1.msra.mxu0 0.0
  %133 = vmatprep.subr.mxu0 0.0
  %134 = vmatpush1.msra.mxu0 0.0
  %135 = vmatprep.subr.mxu0 0.0
  %136 = vmatpush1.msra.mxu0 0.0
  %137 = vmatprep.subr.mxu0 0.0
  %138 = vmatpush1.msra.mxu0 0.0
  %139 = vmatprep.subr.mxu0 0.0
  %140 = vmatpush1.msra.mxu0 0.0
  %141 = vmatprep.subr.mxu0 0.0
  %142 = vmatpush1.msra.mxu0 0.0
  %143 = vmatprep.subr.mxu0 0.0
  %144 = vmatpush1.msra.mxu0 0.0
  %145 = vmatprep.subr.mxu0 0.0
  %146 = vmatpush1.msra.mxu0 0.0
  %147 = vmatprep.subr.mxu0 0.0
  %148 = vmatpush1.msra.mxu0 0.0
  %149 = vmatprep.subr.mxu0 0.0
  %150 = vmatpush1.msra.mxu0 0.0
  %151 = vmatprep.subr.mxu0 0.0
  %152 = vmatpush1.msra.mxu0 0.0
  %153 = vmatprep.subr.mxu0 0.0
  %154 = vmatpush1.msra.mxu0 0.0
  %155 = vmatprep.subr.mxu0 0.0
  %156 = vmatpush1.msra.mxu0 0.0
  %157 = vmatprep.subr.mxu0 0.0
  %158 = vmatpush1.msra.mxu0 %v123
  %159 = vmatprep.subr.mxu0 0.0
  %160 = vmatpush1.msra.mxu0 %v122
  %161 = vmatprep.subr.mxu0 0.0
  %162 = vmatpush2.msra.mxu0 0.0
  %163 = vmatprep.subr.mxu0 0.0
  %164 = vmatpush2.msra.mxu0 0.0
  %165 = vmatprep.subr.mxu0 0.0
  %166 = vmatpush2.msra.mxu0 0.0
  %167 = vmatprep.subr.mxu0 0.0
  %168 = vmatpush2.msra.mxu0 0.0
  %169 = vmatprep.subr.mxu0 0.0
  %170 = vmatpush2.msra.mxu0 0.0
  %171 = vmatprep.subr.mxu0 0.0
  %172 = vmatpush2.msra.mxu0 0.0
  %173 = vmatprep.subr.mxu0 0.0
  %174 = vmatpush2.msra.mxu0 0.0
  %175 = vmatprep.subr.mxu0 0.0
  %176 = vmatpush2.msra.mxu0 0.0
  %177 = vmatprep.subr.mxu0 0.0
  %178 = vmatpush2.msra.mxu0 0.0
  %179 = vmatprep.subr.mxu0 0.0
  %180 = vmatpush2.msra.mxu0 0.0
  %181 = vmatprep.subr.mxu0 0.0
  %182 = vmatpush2.msra.mxu0 0.0
  %183 = vmatprep.subr.mxu0 0.0
  %184 = vmatpush2.msra.mxu0 0.0
  %185 = vmatprep.subr.mxu0 0.0
  %186 = vmatpush2.msra.mxu0 0.0
  %187 = vmatprep.subr.mxu0 0.0
  %188 = vmatpush2.msra.mxu0 0.0
  %189 = vmatprep.subr.mxu0 0.0
  %190 = vmatpush2.msra.mxu0 0.0
  %191 = vmatprep.subr.mxu0 0.0
  %192 = vmatpush2.msra.mxu0 0.0
  %193 = vmatprep.mubr.f32.mxu0 0.0
  %194 = vmatmul.mubr.f32.gmra.mxu0 %v127
  %v195 = vpop.f32.mrf.mxu0
  %v196 = vadd.f32 0.0, %v195
  %v197 = vpop.f32.mrf.mxu0
  %198 = vdwg.mxu0
  %v199 = vpack.c.bf16 %v196, %v196
  %200 = vst [vmem:[%s4] sm:$0x3] %v199
  // Predicated region
  $region18: #{variational_gcn_decoder.4} parent=0 // pred_check
    _
  $region19: #{variational_gcn_decoder.4} parent=0 // pred_check_branch
    %202 = sbr.rel (0) target = $region21
  $region20: #{variational_gcn_decoder.4} parent=0 // pred_region
    _
  $region21: #{variational_gcn_decoder.4} parent=0 // pred_fallthru
    _
  // Predicated region
  $region22: #{variational_gcn_decoder.4} parent=0 // pred_check
    _
  $region23: #{variational_gcn_decoder.4} parent=0 // pred_check_branch
    %204 = sbr.rel (0) target = $region25
  $region24: #{variational_gcn_decoder.4} parent=0 // pred_region
    _
  $region25: #{variational_gcn_decoder.4} parent=0 // pred_fallthru
    _

// kernel: variational_gcn_decoder.5
$region0: #{variational_gcn_decoder.5}
  #allocation0 [shape = 'u32[]', space=smem, size = 0x4, offset = 0x4, fixed_abs, tag = 'smem constant byte address 0x4 - core index']
  #allocation1 [shape = 'u32[144,128]{1,0:T(1,128)}', space=vmem, size = 0x12000, scoped, tag = 'internal scratch']
  %s0 = inlined_call_operand.vmem [shape: bf16[4,128], index: 0, kind: input, shape index: {}]
  %s1 = inlined_call_operand.vmem [shape: bf16[128,128], index: 1, kind: input, shape index: {}]
  %s2 = inlined_call_operand.vmem [shape: f32[4,1], index: 2, kind: input, shape index: {}]
  %s3 = inlined_call_operand.vmem [shape: f32[8,4], index: 3, kind: input, shape index: {}]
  %s4 = inlined_call_operand.vmem [shape: bf16[8,128], index: 4, kind: output, shape index: {}]
  %s5 = sld [smem:[#allocation0]]
  $region26: #{variational_gcn_decoder.5} parent=0
    _
  %s7 = ssub.s32 1, %s5
  %s8 = scalar_select 0, %s7, %s5
  // Predicated region
  $region2: #{variational_gcn_decoder.5} parent=0 // pred_check
    _
  $region3: #{variational_gcn_decoder.5} parent=0 // pred_check_branch
    %10 = sbr.rel (0) target = $region5
  $region4: #{variational_gcn_decoder.5} parent=0 // pred_region
    _
  $region5: #{variational_gcn_decoder.5} parent=0 // pred_fallthru
    _
  // Predicated region
  $region6: #{variational_gcn_decoder.5} parent=0 // pred_check
    _
  $region7: #{variational_gcn_decoder.5} parent=0 // pred_check_branch
    %12 = sbr.rel (0) target = $region9
  $region8: #{variational_gcn_decoder.5} parent=0 // pred_region
    _
  $region9: #{variational_gcn_decoder.5} parent=0 // pred_fallthru
    _
  // Predicated region
  $region10: #{variational_gcn_decoder.5} parent=0 // pred_check
    _
  $region11: #{variational_gcn_decoder.5} parent=0 // pred_check_branch
    %14 = sbr.rel (0) target = $region13
  $region12: #{variational_gcn_decoder.5} parent=0 // pred_region
    _
  $region13: #{variational_gcn_decoder.5} parent=0 // pred_fallthru
    _
  // Predicated region
  $region14: #{variational_gcn_decoder.5} parent=0 // pred_check
    _
  $region15: #{variational_gcn_decoder.5} parent=0 // pred_check_branch
    %16 = sbr.rel (0) target = $region17
  $region16: #{variational_gcn_decoder.5} parent=0 // pred_region
    _
  $region17: #{variational_gcn_decoder.5} parent=0 // pred_fallthru
    _
  %v18 = vld [vmem:[%s0] sm:$0x3]
  %v19 = vld [vmem:[%s1] sm:$0xf]
  %v20 = vld [vmem:[%s1 + $0x4] sm:$0xf]
  %v21 = vld [vmem:[%s1 + $0x8] sm:$0xf]
  %v22 = vld [vmem:[%s1 + $0xc] sm:$0xf]
  %v23 = vld [vmem:[%s1 + $0x10] sm:$0xf]
  %v24 = vld [vmem:[%s1 + $0x14] sm:$0xf]
  %v25 = vld [vmem:[%s1 + $0x18] sm:$0xf]
  %v26 = vld [vmem:[%s1 + $0x1c] sm:$0xf]
  %v27 = vld [vmem:[%s1 + $0x20] sm:$0xf]
  %v28 = vld [vmem:[%s1 + $0x24] sm:$0xf]
  %v29 = vld [vmem:[%s1 + $0x28] sm:$0xf]
  %v30 = vld [vmem:[%s1 + $0x2c] sm:$0xf]
  %v31 = vld [vmem:[%s1 + $0x30] sm:$0xf]
  %v32 = vld [vmem:[%s1 + $0x34] sm:$0xf]
  %v33 = vld [vmem:[%s1 + $0x38] sm:$0xf]
  %v34 = vld [vmem:[%s1 + $0x3c] sm:$0xf]
  %v35 = vld [vmem:[%s2] sm:$0xf]
  %37 = vset.pattern.permute.xlu0 0
  %38 = vperm.xlu0 %37, %v35
  %v39 = vpop.permute.xlu0 %38
  %v57 = vunpack.c.l.b16 %v19
  %v58 = vunpack.c.l.b16 %v20
  %v59 = vunpack.c.l.b16 %v21
  %v60 = vunpack.c.l.b16 %v22
  %v61 = vunpack.c.l.b16 %v23
  %v62 = vunpack.c.l.b16 %v24
  %v63 = vunpack.c.l.b16 %v25
  %v64 = vunpack.c.l.b16 %v26
  %v65 = vunpack.c.l.b16 %v27
  %v66 = vunpack.c.l.b16 %v28
  %v67 = vunpack.c.l.b16 %v29
  %v68 = vunpack.c.l.b16 %v30
  %v69 = vunpack.c.l.b16 %v31
  %v70 = vunpack.c.l.b16 %v32
  %v71 = vunpack.c.l.b16 %v33
  %v72 = vunpack.c.l.b16 %v34
  %v73 = vpack.c.b16 %v58, %v57
  %v74 = vpack.c.b16 %v60, %v59
  %v75 = vpack.c.b16 %v62, %v61
  %v76 = vpack.c.b16 %v64, %v63
  %v77 = vpack.c.b16 %v66, %v65
  %v78 = vpack.c.b16 %v68, %v67
  %v79 = vpack.c.b16 %v70, %v69
  %v80 = vpack.c.b16 %v72, %v71
  %89 = vmatprep.subr.bf16.mxu0 0
  %90 = vmatpush1.bf16.msra.mxu0 %v80
  %91 = vmatprep.subr.bf16.mxu0 0
  %92 = vmatpush1.bf16.msra.mxu0 %v79
  %93 = vmatprep.subr.bf16.mxu0 0
  %94 = vmatpush1.bf16.msra.mxu0 %v78
  %95 = vmatprep.subr.bf16.mxu0 0
  %96 = vmatpush1.bf16.msra.mxu0 %v77
  %97 = vmatprep.subr.bf16.mxu0 0
  %98 = vmatpush1.bf16.msra.mxu0 %v76
  %99 = vmatprep.subr.bf16.mxu0 0
  %100 = vmatpush1.bf16.msra.mxu0 %v75
  %101 = vmatprep.subr.bf16.mxu0 0
  %102 = vmatpush1.bf16.msra.mxu0 %v74
  %103 = vmatprep.subr.bf16.mxu0 0
  %104 = vmatpush1.bf16.msra.mxu0 %v73
  %105 = vmatprep.subr.bf16.mxu0 0
  %106 = vmatpush2.bf16.msra.mxu0 0
  %107 = vmatprep.subr.bf16.mxu0 0
  %108 = vmatpush2.bf16.msra.mxu0 0
  %109 = vmatprep.subr.bf16.mxu0 0
  %110 = vmatpush2.bf16.msra.mxu0 0
  %111 = vmatprep.subr.bf16.mxu0 0
  %112 = vmatpush2.bf16.msra.mxu0 0
  %113 = vmatprep.subr.bf16.mxu0 0
  %114 = vmatpush2.bf16.msra.mxu0 0
  %115 = vmatprep.subr.bf16.mxu0 0
  %116 = vmatpush2.bf16.msra.mxu0 0
  %117 = vmatprep.subr.bf16.mxu0 0
  %118 = vmatpush2.bf16.msra.mxu0 0
  %119 = vmatprep.subr.bf16.mxu0 0
  %120 = vmatpush2.bf16.msra.mxu0 0
  %121 = vmatprep.mubr.bf16.mxu0 0
  %122 = vmatmul.mubr.bf16.gmra.mxu0 %v18
  %v123 = vpop.f32.mrf.mxu0
  %v124 = vadd.f32 %v39, %v123
  %v125 = vpop.f32.mrf.mxu0
  %v126 = vpop.f32.mrf.mxu0
  %v127 = vpop.f32.mrf.mxu0
  %128 = vdwg.mxu0
  %v129 = vld [vmem:[%s3] sm:$0xff]
  %vm130 = vcmask 31744
  %v132 = vsel %vm130, %v129, 0
  %vm134 = vcmask 1043456
  %v136 = vsel %vm134, %v124, 0
  %138 = vmatprep.subr.mxu0 0.0
  %139 = vmatpush1.msra.mxu0 0.0
  %140 = vmatprep.subr.mxu0 0.0
  %141 = vmatpush1.msra.mxu0 0.0
  %142 = vmatprep.subr.mxu0 0.0
  %143 = vmatpush1.msra.mxu0 0.0
  %144 = vmatprep.subr.mxu0 0.0
  %145 = vmatpush1.msra.mxu0 0.0
  %146 = vmatprep.subr.mxu0 0.0
  %147 = vmatpush1.msra.mxu0 0.0
  %148 = vmatprep.subr.mxu0 0.0
  %149 = vmatpush1.msra.mxu0 0.0
  %150 = vmatprep.subr.mxu0 0.0
  %151 = vmatpush1.msra.mxu0 0.0
  %152 = vmatprep.subr.mxu0 0.0
  %153 = vmatpush1.msra.mxu0 0.0
  %154 = vmatprep.subr.mxu0 0.0
  %155 = vmatpush1.msra.mxu0 0.0
  %156 = vmatprep.subr.mxu0 0.0
  %157 = vmatpush1.msra.mxu0 0.0
  %158 = vmatprep.subr.mxu0 0.0
  %159 = vmatpush1.msra.mxu0 0.0
  %160 = vmatprep.subr.mxu0 0.0
  %161 = vmatpush1.msra.mxu0 0.0
  %162 = vmatprep.subr.mxu0 0.0
  %163 = vmatpush1.msra.mxu0 0.0
  %164 = vmatprep.subr.mxu0 0.0
  %165 = vmatpush1.msra.mxu0 0.0
  %166 = vmatprep.subr.mxu0 0.0
  %167 = vmatpush1.msra.mxu0 0.0
  %168 = vmatprep.subr.mxu0 0.0
  %169 = vmatpush1.msra.mxu0 %v136
  %170 = vmatprep.subr.mxu0 0.0
  %171 = vmatpush2.msra.mxu0 0.0
  %172 = vmatprep.subr.mxu0 0.0
  %173 = vmatpush2.msra.mxu0 0.0
  %174 = vmatprep.subr.mxu0 0.0
  %175 = vmatpush2.msra.mxu0 0.0
  %176 = vmatprep.subr.mxu0 0.0
  %177 = vmatpush2.msra.mxu0 0.0
  %178 = vmatprep.subr.mxu0 0.0
  %179 = vmatpush2.msra.mxu0 0.0
  %180 = vmatprep.subr.mxu0 0.0
  %181 = vmatpush2.msra.mxu0 0.0
  %182 = vmatprep.subr.mxu0 0.0
  %183 = vmatpush2.msra.mxu0 0.0
  %184 = vmatprep.subr.mxu0 0.0
  %185 = vmatpush2.msra.mxu0 0.0
  %186 = vmatprep.subr.mxu0 0.0
  %187 = vmatpush2.msra.mxu0 0.0
  %188 = vmatprep.subr.mxu0 0.0
  %189 = vmatpush2.msra.mxu0 0.0
  %190 = vmatprep.subr.mxu0 0.0
  %191 = vmatpush2.msra.mxu0 0.0
  %192 = vmatprep.subr.mxu0 0.0
  %193 = vmatpush2.msra.mxu0 0.0
  %194 = vmatprep.subr.mxu0 0.0
  %195 = vmatpush2.msra.mxu0 0.0
  %196 = vmatprep.subr.mxu0 0.0
  %197 = vmatpush2.msra.mxu0 0.0
  %198 = vmatprep.subr.mxu0 0.0
  %199 = vmatpush2.msra.mxu0 0.0
  %200 = vmatprep.subr.mxu0 0.0
  %201 = vmatpush2.msra.mxu0 0.0
  %202 = vmatprep.mubr.f32.mxu0 0.0
  %203 = vmatmul.mubr.f32.gmra.mxu0 %v132
  %v204 = vpop.f32.mrf.mxu0
  %v205 = vadd.f32 0.0, %v204
  %v206 = vpop.f32.mrf.mxu0
  %207 = vdwg.mxu0
  %v208 = vpack.c.bf16 %v205, %v205
  %209 = vst [vmem:[%s4] sm:$0xf] %v208
  // Predicated region
  $region18: #{variational_gcn_decoder.5} parent=0 // pred_check
    _
  $region19: #{variational_gcn_decoder.5} parent=0 // pred_check_branch
    %211 = sbr.rel (0) target = $region21
  $region20: #{variational_gcn_decoder.5} parent=0 // pred_region
    _
  $region21: #{variational_gcn_decoder.5} parent=0 // pred_fallthru
    _
  // Predicated region
  $region22: #{variational_gcn_decoder.5} parent=0 // pred_check
    _
  $region23: #{variational_gcn_decoder.5} parent=0 // pred_check_branch
    %213 = sbr.rel (0) target = $region25
  $region24: #{variational_gcn_decoder.5} parent=0 // pred_region
    _
  $region25: #{variational_gcn_decoder.5} parent=0 // pred_fallthru
    _

// kernel: variational_gcn_decoder.6
$region0: #{variational_gcn_decoder.6}
  #allocation0 [shape = 'u32[]', space=smem, size = 0x4, offset = 0x4, fixed_abs, tag = 'smem constant byte address 0x4 - core index']
  #allocation1 [shape = 'u32[144,128]{1,0:T(1,128)}', space=vmem, size = 0x12000, scoped, tag = 'internal scratch']
  %s0 = inlined_call_operand.vmem [shape: bf16[8,128], index: 0, kind: input, shape index: {}]
  %s1 = inlined_call_operand.vmem [shape: bf16[128,128], index: 1, kind: input, shape index: {}]
  %s2 = inlined_call_operand.vmem [shape: f32[8,1], index: 2, kind: input, shape index: {}]
  %s3 = inlined_call_operand.vmem [shape: f32[4,8], index: 3, kind: input, shape index: {}]
  %s4 = inlined_call_operand.vmem [shape: bf16[4,128], index: 4, kind: output, shape index: {}]
  %s5 = sld [smem:[#allocation0]]
  $region26: #{variational_gcn_decoder.6} parent=0
    _
  %s7 = ssub.s32 1, %s5
  %s8 = scalar_select 0, %s7, %s5
  // Predicated region
  $region2: #{variational_gcn_decoder.6} parent=0 // pred_check
    _
  $region3: #{variational_gcn_decoder.6} parent=0 // pred_check_branch
    %10 = sbr.rel (0) target = $region5
  $region4: #{variational_gcn_decoder.6} parent=0 // pred_region
    _
  $region5: #{variational_gcn_decoder.6} parent=0 // pred_fallthru
    _
  // Predicated region
  $region6: #{variational_gcn_decoder.6} parent=0 // pred_check
    _
  $region7: #{variational_gcn_decoder.6} parent=0 // pred_check_branch
    %12 = sbr.rel (0) target = $region9
  $region8: #{variational_gcn_decoder.6} parent=0 // pred_region
    _
  $region9: #{variational_gcn_decoder.6} parent=0 // pred_fallthru
    _
  // Predicated region
  $region10: #{variational_gcn_decoder.6} parent=0 // pred_check
    _
  $region11: #{variational_gcn_decoder.6} parent=0 // pred_check_branch
    %14 = sbr.rel (0) target = $region13
  $region12: #{variational_gcn_decoder.6} parent=0 // pred_region
    _
  $region13: #{variational_gcn_decoder.6} parent=0 // pred_fallthru
    _
  // Predicated region
  $region14: #{variational_gcn_decoder.6} parent=0 // pred_check
    _
  $region15: #{variational_gcn_decoder.6} parent=0 // pred_check_branch
    %16 = sbr.rel (0) target = $region17
  $region16: #{variational_gcn_decoder.6} parent=0 // pred_region
    _
  $region17: #{variational_gcn_decoder.6} parent=0 // pred_fallthru
    _
  %v18 = vld [vmem:[%s0] sm:$0xf]
  %v19 = vld [vmem:[%s1] sm:$0xf]
  %v20 = vld [vmem:[%s1 + $0x4] sm:$0xf]
  %v21 = vld [vmem:[%s1 + $0x8] sm:$0xf]
  %v22 = vld [vmem:[%s1 + $0xc] sm:$0xf]
  %v23 = vld [vmem:[%s1 + $0x10] sm:$0xf]
  %v24 = vld [vmem:[%s1 + $0x14] sm:$0xf]
  %v25 = vld [vmem:[%s1 + $0x18] sm:$0xf]
  %v26 = vld [vmem:[%s1 + $0x1c] sm:$0xf]
  %v27 = vld [vmem:[%s1 + $0x20] sm:$0xf]
  %v28 = vld [vmem:[%s1 + $0x24] sm:$0xf]
  %v29 = vld [vmem:[%s1 + $0x28] sm:$0xf]
  %v30 = vld [vmem:[%s1 + $0x2c] sm:$0xf]
  %v31 = vld [vmem:[%s1 + $0x30] sm:$0xf]
  %v32 = vld [vmem:[%s1 + $0x34] sm:$0xf]
  %v33 = vld [vmem:[%s1 + $0x38] sm:$0xf]
  %v34 = vld [vmem:[%s1 + $0x3c] sm:$0xf]
  %v35 = vld [vmem:[%s2] sm:$0xff]
  %37 = vset.pattern.permute.xlu0 0
  %38 = vperm.xlu0 %37, %v35
  %v39 = vpop.permute.xlu0 %38
  %v57 = vunpack.c.l.b16 %v19
  %v58 = vunpack.c.l.b16 %v20
  %v59 = vunpack.c.l.b16 %v21
  %v60 = vunpack.c.l.b16 %v22
  %v61 = vunpack.c.l.b16 %v23
  %v62 = vunpack.c.l.b16 %v24
  %v63 = vunpack.c.l.b16 %v25
  %v64 = vunpack.c.l.b16 %v26
  %v65 = vunpack.c.l.b16 %v27
  %v66 = vunpack.c.l.b16 %v28
  %v67 = vunpack.c.l.b16 %v29
  %v68 = vunpack.c.l.b16 %v30
  %v69 = vunpack.c.l.b16 %v31
  %v70 = vunpack.c.l.b16 %v32
  %v71 = vunpack.c.l.b16 %v33
  %v72 = vunpack.c.l.b16 %v34
  %v73 = vpack.c.b16 %v58, %v57
  %v74 = vpack.c.b16 %v60, %v59
  %v75 = vpack.c.b16 %v62, %v61
  %v76 = vpack.c.b16 %v64, %v63
  %v77 = vpack.c.b16 %v66, %v65
  %v78 = vpack.c.b16 %v68, %v67
  %v79 = vpack.c.b16 %v70, %v69
  %v80 = vpack.c.b16 %v72, %v71
  %89 = vmatprep.subr.bf16.mxu0 0
  %90 = vmatpush1.bf16.msra.mxu0 %v80
  %91 = vmatprep.subr.bf16.mxu0 0
  %92 = vmatpush1.bf16.msra.mxu0 %v79
  %93 = vmatprep.subr.bf16.mxu0 0
  %94 = vmatpush1.bf16.msra.mxu0 %v78
  %95 = vmatprep.subr.bf16.mxu0 0
  %96 = vmatpush1.bf16.msra.mxu0 %v77
  %97 = vmatprep.subr.bf16.mxu0 0
  %98 = vmatpush1.bf16.msra.mxu0 %v76
  %99 = vmatprep.subr.bf16.mxu0 0
  %100 = vmatpush1.bf16.msra.mxu0 %v75
  %101 = vmatprep.subr.bf16.mxu0 0
  %102 = vmatpush1.bf16.msra.mxu0 %v74
  %103 = vmatprep.subr.bf16.mxu0 0
  %104 = vmatpush1.bf16.msra.mxu0 %v73
  %105 = vmatprep.subr.bf16.mxu0 0
  %106 = vmatpush2.bf16.msra.mxu0 0
  %107 = vmatprep.subr.bf16.mxu0 0
  %108 = vmatpush2.bf16.msra.mxu0 0
  %109 = vmatprep.subr.bf16.mxu0 0
  %110 = vmatpush2.bf16.msra.mxu0 0
  %111 = vmatprep.subr.bf16.mxu0 0
  %112 = vmatpush2.bf16.msra.mxu0 0
  %113 = vmatprep.subr.bf16.mxu0 0
  %114 = vmatpush2.bf16.msra.mxu0 0
  %115 = vmatprep.subr.bf16.mxu0 0
  %116 = vmatpush2.bf16.msra.mxu0 0
  %117 = vmatprep.subr.bf16.mxu0 0
  %118 = vmatpush2.bf16.msra.mxu0 0
  %119 = vmatprep.subr.bf16.mxu0 0
  %120 = vmatpush2.bf16.msra.mxu0 0
  %121 = vmatprep.mubr.bf16.mxu0 0
  %122 = vmatmul.mubr.bf16.gmra.mxu0 %v18
  %v123 = vpop.f32.mrf.mxu0
  %v124 = vadd.f32 %v39, %v123
  %v125 = vpop.f32.mrf.mxu0
  %v126 = vpop.f32.mrf.mxu0
  %v127 = vpop.f32.mrf.mxu0
  %128 = vdwg.mxu0
  %v129 = vld [vmem:[%s3] sm:$0xf]
  %vm130 = vcmask 64512
  %v132 = vsel %vm130, %v129, 0
  %134 = vmatprep.subr.mxu0 0.0
  %135 = vmatpush1.msra.mxu0 0.0
  %136 = vmatprep.subr.mxu0 0.0
  %137 = vmatpush1.msra.mxu0 0.0
  %138 = vmatprep.subr.mxu0 0.0
  %139 = vmatpush1.msra.mxu0 0.0
  %140 = vmatprep.subr.mxu0 0.0
  %141 = vmatpush1.msra.mxu0 0.0
  %142 = vmatprep.subr.mxu0 0.0
  %143 = vmatpush1.msra.mxu0 0.0
  %144 = vmatprep.subr.mxu0 0.0
  %145 = vmatpush1.msra.mxu0 0.0
  %146 = vmatprep.subr.mxu0 0.0
  %147 = vmatpush1.msra.mxu0 0.0
  %148 = vmatprep.subr.mxu0 0.0
  %149 = vmatpush1.msra.mxu0 0.0
  %150 = vmatprep.subr.mxu0 0.0
  %151 = vmatpush1.msra.mxu0 0.0
  %152 = vmatprep.subr.mxu0 0.0
  %153 = vmatpush1.msra.mxu0 0.0
  %154 = vmatprep.subr.mxu0 0.0
  %155 = vmatpush1.msra.mxu0 0.0
  %156 = vmatprep.subr.mxu0 0.0
  %157 = vmatpush1.msra.mxu0 0.0
  %158 = vmatprep.subr.mxu0 0.0
  %159 = vmatpush1.msra.mxu0 0.0
  %160 = vmatprep.subr.mxu0 0.0
  %161 = vmatpush1.msra.mxu0 0.0
  %162 = vmatprep.subr.mxu0 0.0
  %163 = vmatpush1.msra.mxu0 0.0
  %164 = vmatprep.subr.mxu0 0.0
  %165 = vmatpush1.msra.mxu0 %v124
  %166 = vmatprep.subr.mxu0 0.0
  %167 = vmatpush2.msra.mxu0 0.0
  %168 = vmatprep.subr.mxu0 0.0
  %169 = vmatpush2.msra.mxu0 0.0
  %170 = vmatprep.subr.mxu0 0.0
  %171 = vmatpush2.msra.mxu0 0.0
  %172 = vmatprep.subr.mxu0 0.0
  %173 = vmatpush2.msra.mxu0 0.0
  %174 = vmatprep.subr.mxu0 0.0
  %175 = vmatpush2.msra.mxu0 0.0
  %176 = vmatprep.subr.mxu0 0.0
  %177 = vmatpush2.msra.mxu0 0.0
  %178 = vmatprep.subr.mxu0 0.0
  %179 = vmatpush2.msra.mxu0 0.0
  %180 = vmatprep.subr.mxu0 0.0
  %181 = vmatpush2.msra.mxu0 0.0
  %182 = vmatprep.subr.mxu0 0.0
  %183 = vmatpush2.msra.mxu0 0.0
  %184 = vmatprep.subr.mxu0 0.0
  %185 = vmatpush2.msra.mxu0 0.0
  %186 = vmatprep.subr.mxu0 0.0
  %187 = vmatpush2.msra.mxu0 0.0
  %188 = vmatprep.subr.mxu0 0.0
  %189 = vmatpush2.msra.mxu0 0.0
  %190 = vmatprep.subr.mxu0 0.0
  %191 = vmatpush2.msra.mxu0 0.0
  %192 = vmatprep.subr.mxu0 0.0
  %193 = vmatpush2.msra.mxu0 0.0
  %194 = vmatprep.subr.mxu0 0.0
  %195 = vmatpush2.msra.mxu0 0.0
  %196 = vmatprep.subr.mxu0 0.0
  %197 = vmatpush2.msra.mxu0 0.0
  %198 = vmatprep.mubr.f32.mxu0 0.0
  %199 = vmatmul.mubr.f32.gmra.mxu0 %v132
  %v200 = vpop.f32.mrf.mxu0
  %v201 = vadd.f32 0.0, %v200
  %v202 = vpop.f32.mrf.mxu0
  %203 = vdwg.mxu0
  %v204 = vpack.c.bf16 %v201, %v201
  %205 = vst [vmem:[%s4] sm:$0x3] %v204
  // Predicated region
  $region18: #{variational_gcn_decoder.6} parent=0 // pred_check
    _
  $region19: #{variational_gcn_decoder.6} parent=0 // pred_check_branch
    %207 = sbr.rel (0) target = $region21
  $region20: #{variational_gcn_decoder.6} parent=0 // pred_region
    _
  $region21: #{variational_gcn_decoder.6} parent=0 // pred_fallthru
    _
  // Predicated region
  $region22: #{variational_gcn_decoder.6} parent=0 // pred_check
    _
  $region23: #{variational_gcn_decoder.6} parent=0 // pred_check_branch
    %209 = sbr.rel (0) target = $region25
  $region24: #{variational_gcn_decoder.6} parent=0 // pred_region
    _
  $region25: #{variational_gcn_decoder.6} parent=0 // pred_fallthru
    _

// kernel: variational_gcn_decoder.7
$region0: #{variational_gcn_decoder.7}
  #allocation0 [shape = 'u32[]', space=smem, size = 0x4, offset = 0x4, fixed_abs, tag = 'smem constant byte address 0x4 - core index']
  #allocation1 [shape = 'u32[144,128]{1,0:T(1,128)}', space=vmem, size = 0x12000, scoped, tag = 'internal scratch']
  %s0 = inlined_call_operand.vmem [shape: bf16[4,128], index: 0, kind: input, shape index: {}]
  %s1 = inlined_call_operand.vmem [shape: bf16[128,128], index: 1, kind: input, shape index: {}]
  %s2 = inlined_call_operand.vmem [shape: f32[4,1], index: 2, kind: input, shape index: {}]
  %s3 = inlined_call_operand.vmem [shape: f32[32,4], index: 3, kind: input, shape index: {}]
  %s4 = inlined_call_operand.vmem [shape: f32[32,1], index: 4, kind: input, shape index: {}]
  %s5 = inlined_call_operand.vmem [shape: f32[16,32], index: 5, kind: input, shape index: {}]
  %s6 = inlined_call_operand.vmem [shape: f32[16,1], index: 6, kind: input, shape index: {}]
  %s7 = inlined_call_operand.vmem [shape: f32[4,16], index: 7, kind: input, shape index: {}]
  %s8 = inlined_call_operand.vmem [shape: f32[4,1], index: 8, kind: input, shape index: {}]
  %s9 = inlined_call_operand.vmem [shape: f32[4,128], index: 9, kind: output, shape index: {}]
  %s10 = sld [smem:[#allocation0]]
  $region46: #{variational_gcn_decoder.7} parent=0
    _
  %s12 = ssub.s32 1, %s10
  %s13 = scalar_select 0, %s12, %s10
  // Predicated region
  $region2: #{variational_gcn_decoder.7} parent=0 // pred_check
    _
  $region3: #{variational_gcn_decoder.7} parent=0 // pred_check_branch
    %15 = sbr.rel (0) target = $region5
  $region4: #{variational_gcn_decoder.7} parent=0 // pred_region
    _
  $region5: #{variational_gcn_decoder.7} parent=0 // pred_fallthru
    _
  // Predicated region
  $region6: #{variational_gcn_decoder.7} parent=0 // pred_check
    _
  $region7: #{variational_gcn_decoder.7} parent=0 // pred_check_branch
    %17 = sbr.rel (0) target = $region9
  $region8: #{variational_gcn_decoder.7} parent=0 // pred_region
    _
  $region9: #{variational_gcn_decoder.7} parent=0 // pred_fallthru
    _
  // Predicated region
  $region10: #{variational_gcn_decoder.7} parent=0 // pred_check
    _
  $region11: #{variational_gcn_decoder.7} parent=0 // pred_check_branch
    %19 = sbr.rel (0) target = $region13
  $region12: #{variational_gcn_decoder.7} parent=0 // pred_region
    _
  $region13: #{variational_gcn_decoder.7} parent=0 // pred_fallthru
    _
  // Predicated region
  $region14: #{variational_gcn_decoder.7} parent=0 // pred_check
    _
  $region15: #{variational_gcn_decoder.7} parent=0 // pred_check_branch
    %21 = sbr.rel (0) target = $region17
  $region16: #{variational_gcn_decoder.7} parent=0 // pred_region
    _
  $region17: #{variational_gcn_decoder.7} parent=0 // pred_fallthru
    _
  // Predicated region
  $region18: #{variational_gcn_decoder.7} parent=0 // pred_check
    _
  $region19: #{variational_gcn_decoder.7} parent=0 // pred_check_branch
    %23 = sbr.rel (0) target = $region21
  $region20: #{variational_gcn_decoder.7} parent=0 // pred_region
    _
  $region21: #{variational_gcn_decoder.7} parent=0 // pred_fallthru
    _
  // Predicated region
  $region22: #{variational_gcn_decoder.7} parent=0 // pred_check
    _
  $region23: #{variational_gcn_decoder.7} parent=0 // pred_check_branch
    %25 = sbr.rel (0) target = $region25
  $region24: #{variational_gcn_decoder.7} parent=0 // pred_region
    _
  $region25: #{variational_gcn_decoder.7} parent=0 // pred_fallthru
    _
  // Predicated region
  $region26: #{variational_gcn_decoder.7} parent=0 // pred_check
    _
  $region27: #{variational_gcn_decoder.7} parent=0 // pred_check_branch
    %27 = sbr.rel (0) target = $region29
  $region28: #{variational_gcn_decoder.7} parent=0 // pred_region
    _
  $region29: #{variational_gcn_decoder.7} parent=0 // pred_fallthru
    _
  // Predicated region
  $region30: #{variational_gcn_decoder.7} parent=0 // pred_check
    _
  $region31: #{variational_gcn_decoder.7} parent=0 // pred_check_branch
    %29 = sbr.rel (0) target = $region33
  $region32: #{variational_gcn_decoder.7} parent=0 // pred_region
    _
  $region33: #{variational_gcn_decoder.7} parent=0 // pred_fallthru
    _
  // Predicated region
  $region34: #{variational_gcn_decoder.7} parent=0 // pred_check
    _
  $region35: #{variational_gcn_decoder.7} parent=0 // pred_check_branch
    %31 = sbr.rel (0) target = $region37
  $region36: #{variational_gcn_decoder.7} parent=0 // pred_region
    _
  $region37: #{variational_gcn_decoder.7} parent=0 // pred_fallthru
    _
  %v33 = vld [vmem:[%s0] sm:$0x3]
  %v34 = vld [vmem:[%s1] sm:$0xf]
  %v35 = vld [vmem:[%s1 + $0x4] sm:$0xf]
  %v36 = vld [vmem:[%s1 + $0x8] sm:$0xf]
  %v37 = vld [vmem:[%s1 + $0xc] sm:$0xf]
  %v38 = vld [vmem:[%s1 + $0x10] sm:$0xf]
  %v39 = vld [vmem:[%s1 + $0x14] sm:$0xf]
  %v40 = vld [vmem:[%s1 + $0x18] sm:$0xf]
  %v41 = vld [vmem:[%s1 + $0x1c] sm:$0xf]
  %v42 = vld [vmem:[%s1 + $0x20] sm:$0xf]
  %v43 = vld [vmem:[%s1 + $0x24] sm:$0xf]
  %v44 = vld [vmem:[%s1 + $0x28] sm:$0xf]
  %v45 = vld [vmem:[%s1 + $0x2c] sm:$0xf]
  %v46 = vld [vmem:[%s1 + $0x30] sm:$0xf]
  %v47 = vld [vmem:[%s1 + $0x34] sm:$0xf]
  %v48 = vld [vmem:[%s1 + $0x38] sm:$0xf]
  %v49 = vld [vmem:[%s1 + $0x3c] sm:$0xf]
  %v50 = vld [vmem:[%s2] sm:$0xf]
  %52 = vset.pattern.permute.xlu0 0
  %53 = vperm.xlu0 %52, %v50
  %v54 = vpop.permute.xlu0 %53
  %v72 = vunpack.c.l.b16 %v34
  %v73 = vunpack.c.l.b16 %v35
  %v74 = vunpack.c.l.b16 %v36
  %v75 = vunpack.c.l.b16 %v37
  %v76 = vunpack.c.l.b16 %v38
  %v77 = vunpack.c.l.b16 %v39
  %v78 = vunpack.c.l.b16 %v40
  %v79 = vunpack.c.l.b16 %v41
  %v80 = vunpack.c.l.b16 %v42
  %v81 = vunpack.c.l.b16 %v43
  %v82 = vunpack.c.l.b16 %v44
  %v83 = vunpack.c.l.b16 %v45
  %v84 = vunpack.c.l.b16 %v46
  %v85 = vunpack.c.l.b16 %v47
  %v86 = vunpack.c.l.b16 %v48
  %v87 = vunpack.c.l.b16 %v49
  %v88 = vpack.c.b16 %v73, %v72
  %v89 = vpack.c.b16 %v75, %v74
  %v90 = vpack.c.b16 %v77, %v76
  %v91 = vpack.c.b16 %v79, %v78
  %v92 = vpack.c.b16 %v81, %v80
  %v93 = vpack.c.b16 %v83, %v82
  %v94 = vpack.c.b16 %v85, %v84
  %v95 = vpack.c.b16 %v87, %v86
  %104 = vmatprep.subr.bf16.mxu0 0
  %105 = vmatpush1.bf16.msra.mxu0 %v95
  %106 = vmatprep.subr.bf16.mxu0 0
  %107 = vmatpush1.bf16.msra.mxu0 %v94
  %108 = vmatprep.subr.bf16.mxu0 0
  %109 = vmatpush1.bf16.msra.mxu0 %v93
  %110 = vmatprep.subr.bf16.mxu0 0
  %111 = vmatpush1.bf16.msra.mxu0 %v92
  %112 = vmatprep.subr.bf16.mxu0 0
  %113 = vmatpush1.bf16.msra.mxu0 %v91
  %114 = vmatprep.subr.bf16.mxu0 0
  %115 = vmatpush1.bf16.msra.mxu0 %v90
  %116 = vmatprep.subr.bf16.mxu0 0
  %117 = vmatpush1.bf16.msra.mxu0 %v89
  %118 = vmatprep.subr.bf16.mxu0 0
  %119 = vmatpush1.bf16.msra.mxu0 %v88
  %120 = vmatprep.subr.bf16.mxu0 0
  %121 = vmatpush2.bf16.msra.mxu0 0
  %122 = vmatprep.subr.bf16.mxu0 0
  %123 = vmatpush2.bf16.msra.mxu0 0
  %124 = vmatprep.subr.bf16.mxu0 0
  %125 = vmatpush2.bf16.msra.mxu0 0
  %126 = vmatprep.subr.bf16.mxu0 0
  %127 = vmatpush2.bf16.msra.mxu0 0
  %128 = vmatprep.subr.bf16.mxu0 0
  %129 = vmatpush2.bf16.msra.mxu0 0
  %130 = vmatprep.subr.bf16.mxu0 0
  %131 = vmatpush2.bf16.msra.mxu0 0
  %132 = vmatprep.subr.bf16.mxu0 0
  %133 = vmatpush2.bf16.msra.mxu0 0
  %134 = vmatprep.subr.bf16.mxu0 0
  %135 = vmatpush2.bf16.msra.mxu0 0
  %136 = vmatprep.mubr.bf16.mxu0 0
  %137 = vmatmul.mubr.bf16.gmra.mxu0 %v33
  %v138 = vpop.f32.mrf.mxu0
  %v139 = vadd.f32 %v54, %v138
  %v140 = vpop.f32.mrf.mxu0
  %v141 = vpop.f32.mrf.mxu0
  %v142 = vpop.f32.mrf.mxu0
  %143 = vdwg.mxu0
  %v144 = vld [vmem:[%s3] sm:$0xff]
  %v145 = vld [vmem:[%s3 + $0x8] sm:$0xff]
  %v146 = vld [vmem:[%s3 + $0x10] sm:$0xff]
  %v147 = vld [vmem:[%s3 + $0x18] sm:$0xff]
  %v148 = vld [vmem:[%s4] sm:$0xff]
  %v149 = vld [vmem:[%s4 + $0x8] sm:$0xff]
  %v150 = vld [vmem:[%s4 + $0x10] sm:$0xff]
  %v151 = vld [vmem:[%s4 + $0x18] sm:$0xff]
  %153 = vset.pattern.permute.xlu0 0
  %154 = vperm.xlu0 %153, %v148
  %v155 = vpop.permute.xlu0 %154
  %158 = vset.pattern.permute.xlu0 0
  %159 = vperm.xlu0 %158, %v149
  %v160 = vpop.permute.xlu0 %159
  %163 = vset.pattern.permute.xlu0 0
  %164 = vperm.xlu0 %163, %v150
  %v165 = vpop.permute.xlu0 %164
  %168 = vset.pattern.permute.xlu0 0
  %169 = vperm.xlu0 %168, %v151
  %v170 = vpop.permute.xlu0 %169
  %vm172 = vcmask 31744
  %v174 = vsel %vm172, %v144, 0
  %v177 = vsel %vm172, %v145, 0
  %v180 = vsel %vm172, %v146, 0
  %v183 = vsel %vm172, %v147, 0
  %vm185 = vcmask 1043456
  %v187 = vsel %vm185, %v139, 0
  %189 = vmatprep.subr.mxu0 0.0
  %190 = vmatpush1.msra.mxu0 0.0
  %191 = vmatprep.subr.mxu0 0.0
  %192 = vmatpush1.msra.mxu0 0.0
  %193 = vmatprep.subr.mxu0 0.0
  %194 = vmatpush1.msra.mxu0 0.0
  %195 = vmatprep.subr.mxu0 0.0
  %196 = vmatpush1.msra.mxu0 0.0
  %197 = vmatprep.subr.mxu0 0.0
  %198 = vmatpush1.msra.mxu0 0.0
  %199 = vmatprep.subr.mxu0 0.0
  %200 = vmatpush1.msra.mxu0 0.0
  %201 = vmatprep.subr.mxu0 0.0
  %202 = vmatpush1.msra.mxu0 0.0
  %203 = vmatprep.subr.mxu0 0.0
  %204 = vmatpush1.msra.mxu0 0.0
  %205 = vmatprep.subr.mxu0 0.0
  %206 = vmatpush1.msra.mxu0 0.0
  %207 = vmatprep.subr.mxu0 0.0
  %208 = vmatpush1.msra.mxu0 0.0
  %209 = vmatprep.subr.mxu0 0.0
  %210 = vmatpush1.msra.mxu0 0.0
  %211 = vmatprep.subr.mxu0 0.0
  %212 = vmatpush1.msra.mxu0 0.0
  %213 = vmatprep.subr.mxu0 0.0
  %214 = vmatpush1.msra.mxu0 0.0
  %215 = vmatprep.subr.mxu0 0.0
  %216 = vmatpush1.msra.mxu0 0.0
  %217 = vmatprep.subr.mxu0 0.0
  %218 = vmatpush1.msra.mxu0 0.0
  %219 = vmatprep.subr.mxu0 0.0
  %220 = vmatpush1.msra.mxu0 %v187
  %221 = vmatprep.subr.mxu0 0.0
  %222 = vmatpush2.msra.mxu0 0.0
  %223 = vmatprep.subr.mxu0 0.0
  %224 = vmatpush2.msra.mxu0 0.0
  %225 = vmatprep.subr.mxu0 0.0
  %226 = vmatpush2.msra.mxu0 0.0
  %227 = vmatprep.subr.mxu0 0.0
  %228 = vmatpush2.msra.mxu0 0.0
  %229 = vmatprep.subr.mxu0 0.0
  %230 = vmatpush2.msra.mxu0 0.0
  %231 = vmatprep.subr.mxu0 0.0
  %232 = vmatpush2.msra.mxu0 0.0
  %233 = vmatprep.subr.mxu0 0.0
  %234 = vmatpush2.msra.mxu0 0.0
  %235 = vmatprep.subr.mxu0 0.0
  %236 = vmatpush2.msra.mxu0 0.0
  %237 = vmatprep.subr.mxu0 0.0
  %238 = vmatpush2.msra.mxu0 0.0
  %239 = vmatprep.subr.mxu0 0.0
  %240 = vmatpush2.msra.mxu0 0.0
  %241 = vmatprep.subr.mxu0 0.0
  %242 = vmatpush2.msra.mxu0 0.0
  %243 = vmatprep.subr.mxu0 0.0
  %244 = vmatpush2.msra.mxu0 0.0
  %245 = vmatprep.subr.mxu0 0.0
  %246 = vmatpush2.msra.mxu0 0.0
  %247 = vmatprep.subr.mxu0 0.0
  %248 = vmatpush2.msra.mxu0 0.0
  %249 = vmatprep.subr.mxu0 0.0
  %250 = vmatpush2.msra.mxu0 0.0
  %251 = vmatprep.subr.mxu0 0.0
  %252 = vmatpush2.msra.mxu0 0.0
  %253 = vmatprep.mubr.f32.mxu0 0.0
  %254 = vmatmul.mubr.f32.gmra.mxu0 %v174
  %v255 = vpop.f32.mrf.mxu0
  %v256 = vadd.f32 %v155, %v255
  %v257 = vpop.f32.mrf.mxu0
  %258 = vmatprep.mubr.f32.mxu0 0.0
  %259 = vmatmul.mubr.f32.gmra.mxu0 %v177
  %v260 = vpop.f32.mrf.mxu0
  %v261 = vadd.f32 %v160, %v260
  %v262 = vpop.f32.mrf.mxu0
  %263 = vmatprep.mubr.f32.mxu0 0.0
  %264 = vmatmul.mubr.f32.gmra.mxu0 %v180
  %v265 = vpop.f32.mrf.mxu0
  %v266 = vadd.f32 %v165, %v265
  %v267 = vpop.f32.mrf.mxu0
  %268 = vmatprep.mubr.f32.mxu0 0.0
  %269 = vmatmul.mubr.f32.gmra.mxu0 %v183
  %v270 = vpop.f32.mrf.mxu0
  %v271 = vadd.f32 %v170, %v270
  %v272 = vpop.f32.mrf.mxu0
  %273 = vdwg.mxu0
  %vm274 = vcmp.gt.f32.partialorder %v256, 0.0
  %vm275 = vcmp.gt.f32.partialorder %v261, 0.0
  %vm276 = vcmp.gt.f32.partialorder %v266, 0.0
  %vm277 = vcmp.gt.f32.partialorder %v271, 0.0
  %v278 = vmul.f32 %v256, 0.01
  %v279 = vmul.f32 %v261, 0.01
  %v280 = vmul.f32 %v266, 0.01
  %v281 = vmul.f32 %v271, 0.01
  %v282 = vsel %vm274, %v256, %v278
  %v283 = vsel %vm275, %v261, %v279
  %v284 = vsel %vm276, %v266, %v280
  %v285 = vsel %vm277, %v271, %v281
  %v286 = vld [vmem:[%s5] sm:$0xff]
  %v287 = vld [vmem:[%s5 + $0x8] sm:$0xff]
  %v288 = vld [vmem:[%s6] sm:$0xff]
  %v289 = vld [vmem:[%s6 + $0x8] sm:$0xff]
  %291 = vset.pattern.permute.xlu0 0
  %292 = vperm.xlu0 %291, %v288
  %v293 = vpop.permute.xlu0 %292
  %296 = vset.pattern.permute.xlu0 0
  %297 = vperm.xlu0 %296, %v289
  %v298 = vpop.permute.xlu0 %297
  %vm300 = vcmask 261120
  %v302 = vsel %vm300, %v286, 0
  %v305 = vsel %vm300, %v287, 0
  %307 = vmatprep.subr.mxu0 0.0
  %308 = vmatpush1.msra.mxu0 0.0
  %309 = vmatprep.subr.mxu0 0.0
  %310 = vmatpush1.msra.mxu0 0.0
  %311 = vmatprep.subr.mxu0 0.0
  %312 = vmatpush1.msra.mxu0 0.0
  %313 = vmatprep.subr.mxu0 0.0
  %314 = vmatpush1.msra.mxu0 0.0
  %315 = vmatprep.subr.mxu0 0.0
  %316 = vmatpush1.msra.mxu0 0.0
  %317 = vmatprep.subr.mxu0 0.0
  %318 = vmatpush1.msra.mxu0 0.0
  %319 = vmatprep.subr.mxu0 0.0
  %320 = vmatpush1.msra.mxu0 0.0
  %321 = vmatprep.subr.mxu0 0.0
  %322 = vmatpush1.msra.mxu0 0.0
  %323 = vmatprep.subr.mxu0 0.0
  %324 = vmatpush1.msra.mxu0 0.0
  %325 = vmatprep.subr.mxu0 0.0
  %326 = vmatpush1.msra.mxu0 0.0
  %327 = vmatprep.subr.mxu0 0.0
  %328 = vmatpush1.msra.mxu0 0.0
  %329 = vmatprep.subr.mxu0 0.0
  %330 = vmatpush1.msra.mxu0 0.0
  %331 = vmatprep.subr.mxu0 0.0
  %332 = vmatpush1.msra.mxu0 %v285
  %333 = vmatprep.subr.mxu0 0.0
  %334 = vmatpush1.msra.mxu0 %v284
  %335 = vmatprep.subr.mxu0 0.0
  %336 = vmatpush1.msra.mxu0 %v283
  %337 = vmatprep.subr.mxu0 0.0
  %338 = vmatpush1.msra.mxu0 %v282
  %339 = vmatprep.subr.mxu0 0.0
  %340 = vmatpush2.msra.mxu0 0.0
  %341 = vmatprep.subr.mxu0 0.0
  %342 = vmatpush2.msra.mxu0 0.0
  %343 = vmatprep.subr.mxu0 0.0
  %344 = vmatpush2.msra.mxu0 0.0
  %345 = vmatprep.subr.mxu0 0.0
  %346 = vmatpush2.msra.mxu0 0.0
  %347 = vmatprep.subr.mxu0 0.0
  %348 = vmatpush2.msra.mxu0 0.0
  %349 = vmatprep.subr.mxu0 0.0
  %350 = vmatpush2.msra.mxu0 0.0
  %351 = vmatprep.subr.mxu0 0.0
  %352 = vmatpush2.msra.mxu0 0.0
  %353 = vmatprep.subr.mxu0 0.0
  %354 = vmatpush2.msra.mxu0 0.0
  %355 = vmatprep.subr.mxu0 0.0
  %356 = vmatpush2.msra.mxu0 0.0
  %357 = vmatprep.subr.mxu0 0.0
  %358 = vmatpush2.msra.mxu0 0.0
  %359 = vmatprep.subr.mxu0 0.0
  %360 = vmatpush2.msra.mxu0 0.0
  %361 = vmatprep.subr.mxu0 0.0
  %362 = vmatpush2.msra.mxu0 0.0
  %363 = vmatprep.subr.mxu0 0.0
  %364 = vmatpush2.msra.mxu0 0.0
  %365 = vmatprep.subr.mxu0 0.0
  %366 = vmatpush2.msra.mxu0 0.0
  %367 = vmatprep.subr.mxu0 0.0
  %368 = vmatpush2.msra.mxu0 0.0
  %369 = vmatprep.subr.mxu0 0.0
  %370 = vmatpush2.msra.mxu0 0.0
  %371 = vmatprep.mubr.f32.mxu0 0.0
  %372 = vmatmul.mubr.f32.gmra.mxu0 %v302
  %v373 = vpop.f32.mrf.mxu0
  %v374 = vadd.f32 %v293, %v373
  %v375 = vpop.f32.mrf.mxu0
  %376 = vmatprep.mubr.f32.mxu0 0.0
  %377 = vmatmul.mubr.f32.gmra.mxu0 %v305
  %v378 = vpop.f32.mrf.mxu0
  %v379 = vadd.f32 %v298, %v378
  %v380 = vpop.f32.mrf.mxu0
  %381 = vdwg.mxu0
  %vm382 = vcmp.gt.f32.partialorder %v374, 0.0
  %vm383 = vcmp.gt.f32.partialorder %v379, 0.0
  %v384 = vmul.f32 %v374, 0.01
  %v385 = vmul.f32 %v379, 0.01
  %v386 = vsel %vm382, %v374, %v384
  %v387 = vsel %vm383, %v379, %v385
  %v388 = vld [vmem:[%s7] sm:$0xf]
  %v389 = vld [vmem:[%s8] sm:$0xf]
  %391 = vset.pattern.permute.xlu0 0
  %392 = vperm.xlu0 %391, %v389
  %v393 = vpop.permute.xlu0 %392
  %vm395 = vcmask 130048
  %v397 = vsel %vm395, %v388, 0
  %399 = vmatprep.subr.mxu0 0.0
  %400 = vmatpush1.msra.mxu0 0.0
  %401 = vmatprep.subr.mxu0 0.0
  %402 = vmatpush1.msra.mxu0 0.0
  %403 = vmatprep.subr.mxu0 0.0
  %404 = vmatpush1.msra.mxu0 0.0
  %405 = vmatprep.subr.mxu0 0.0
  %406 = vmatpush1.msra.mxu0 0.0
  %407 = vmatprep.subr.mxu0 0.0
  %408 = vmatpush1.msra.mxu0 0.0
  %409 = vmatprep.subr.mxu0 0.0
  %410 = vmatpush1.msra.mxu0 0.0
  %411 = vmatprep.subr.mxu0 0.0
  %412 = vmatpush1.msra.mxu0 0.0
  %413 = vmatprep.subr.mxu0 0.0
  %414 = vmatpush1.msra.mxu0 0.0
  %415 = vmatprep.subr.mxu0 0.0
  %416 = vmatpush1.msra.mxu0 0.0
  %417 = vmatprep.subr.mxu0 0.0
  %418 = vmatpush1.msra.mxu0 0.0
  %419 = vmatprep.subr.mxu0 0.0
  %420 = vmatpush1.msra.mxu0 0.0
  %421 = vmatprep.subr.mxu0 0.0
  %422 = vmatpush1.msra.mxu0 0.0
  %423 = vmatprep.subr.mxu0 0.0
  %424 = vmatpush1.msra.mxu0 0.0
  %425 = vmatprep.subr.mxu0 0.0
  %426 = vmatpush1.msra.mxu0 0.0
  %427 = vmatprep.subr.mxu0 0.0
  %428 = vmatpush1.msra.mxu0 %v387
  %429 = vmatprep.subr.mxu0 0.0
  %430 = vmatpush1.msra.mxu0 %v386
  %431 = vmatprep.subr.mxu0 0.0
  %432 = vmatpush2.msra.mxu0 0.0
  %433 = vmatprep.subr.mxu0 0.0
  %434 = vmatpush2.msra.mxu0 0.0
  %435 = vmatprep.subr.mxu0 0.0
  %436 = vmatpush2.msra.mxu0 0.0
  %437 = vmatprep.subr.mxu0 0.0
  %438 = vmatpush2.msra.mxu0 0.0
  %439 = vmatprep.subr.mxu0 0.0
  %440 = vmatpush2.msra.mxu0 0.0
  %441 = vmatprep.subr.mxu0 0.0
  %442 = vmatpush2.msra.mxu0 0.0
  %443 = vmatprep.subr.mxu0 0.0
  %444 = vmatpush2.msra.mxu0 0.0
  %445 = vmatprep.subr.mxu0 0.0
  %446 = vmatpush2.msra.mxu0 0.0
  %447 = vmatprep.subr.mxu0 0.0
  %448 = vmatpush2.msra.mxu0 0.0
  %449 = vmatprep.subr.mxu0 0.0
  %450 = vmatpush2.msra.mxu0 0.0
  %451 = vmatprep.subr.mxu0 0.0
  %452 = vmatpush2.msra.mxu0 0.0
  %453 = vmatprep.subr.mxu0 0.0
  %454 = vmatpush2.msra.mxu0 0.0
  %455 = vmatprep.subr.mxu0 0.0
  %456 = vmatpush2.msra.mxu0 0.0
  %457 = vmatprep.subr.mxu0 0.0
  %458 = vmatpush2.msra.mxu0 0.0
  %459 = vmatprep.subr.mxu0 0.0
  %460 = vmatpush2.msra.mxu0 0.0
  %461 = vmatprep.subr.mxu0 0.0
  %462 = vmatpush2.msra.mxu0 0.0
  %463 = vmatprep.mubr.f32.mxu0 0.0
  %464 = vmatmul.mubr.f32.gmra.mxu0 %v397
  %v465 = vpop.f32.mrf.mxu0
  %v466 = vadd.f32 %v393, %v465
  %v467 = vpop.f32.mrf.mxu0
  %468 = vdwg.mxu0
  %vm469 = vcmp.gt.f32.partialorder %v466, 0.0
  %v470 = vmul.f32 %v466, 0.01
  %v471 = vsel %vm469, %v466, %v470
  %472 = vst [vmem:[%s9] sm:$0xf] %v471
  // Predicated region
  $region38: #{variational_gcn_decoder.7} parent=0 // pred_check
    _
  $region39: #{variational_gcn_decoder.7} parent=0 // pred_check_branch
    %474 = sbr.rel (0) target = $region41
  $region40: #{variational_gcn_decoder.7} parent=0 // pred_region
    _
  $region41: #{variational_gcn_decoder.7} parent=0 // pred_fallthru
    _
  // Predicated region
  $region42: #{variational_gcn_decoder.7} parent=0 // pred_check
    _
  $region43: #{variational_gcn_decoder.7} parent=0 // pred_check_branch
    %476 = sbr.rel (0) target = $region45
  $region44: #{variational_gcn_decoder.7} parent=0 // pred_region
    _
  $region45: #{variational_gcn_decoder.7} parent=0 // pred_fallthru
    _

</llo_original>
